<compile_context>
chip_gen: v7x
topology: tpu7x:2x2x1
jax: 0.10.0
libtpu: 0.0.40
codegen_flags: <defaults>
</compile_context>

<pallas_src>
import functools

import jax
import jax.numpy as jnp
from jax.experimental import pallas as pl
from jax.experimental.pallas import tpu as pltpu


_INV_SQRT2 = 0.7071067811865476


# ----------------------------------------------------------------------------
# in-kernel math helpers (only primitives with guaranteed Mosaic lowerings)
# ----------------------------------------------------------------------------
def _erf_approx(x):
    """Abramowitz & Stegun 7.1.26 erf approximation (|err| < 1.5e-7).

    Used instead of lax.erf because erf is not guaranteed to have a Pallas/TPU
    lowering; accuracy is below f32 noise for this workload.
    """
    a = jnp.abs(x)
    t = 1.0 / (1.0 + 0.3275911 * a)
    poly = ((((1.061405429 * t - 1.453152027) * t + 1.421413741) * t
             - 0.284496736) * t + 0.254829592) * t
    y = 1.0 - poly * jnp.exp(-a * a)
    return jnp.where(x >= 0.0, y, -y)


def _gelu_exact(x):
    # PyTorch nn.GELU() default ('none'): 0.5 * x * (1 + erf(x / sqrt(2)))
    return 0.5 * x * (1.0 + _erf_approx(x * _INV_SQRT2))


def _layer_norm(x, gamma, beta, eps):
    mean = jnp.mean(x, axis=-1, keepdims=True)
    var = jnp.mean(jnp.square(x - mean), axis=-1, keepdims=True)
    return (x - mean) * jax.lax.rsqrt(var + eps) * gamma + beta


# ----------------------------------------------------------------------------
# fused MLM-head kernel
#   grid = (N // TM, V // TV); row axis parallel, vocab axis arbitrary.
# ----------------------------------------------------------------------------
def _mlm_head_kernel(x_ref, wt_ref, bt_ref, g_ref, b_ref, wd_ref, bd_ref,
                     out_ref, t_ref, *, eps, compute_dtype):
    # Transform (dense -> GELU -> LayerNorm) once per row tile; reuse across the
    # vocab grid axis via the VMEM scratch t_ref.
    @pl.when(pl.program_id(1) == 0)
    def _():
        x = x_ref[...].astype(compute_dtype)
        h = jnp.dot(x, wt_ref[...].astype(compute_dtype),
                    preferred_element_type=jnp.float32) + bt_ref[...]
        h = _gelu_exact(h)
        t_ref[...] = _layer_norm(h, g_ref[...], b_ref[...], eps)

    logits = jnp.dot(t_ref[...].astype(compute_dtype),
                     wd_ref[...].astype(compute_dtype),
                     preferred_element_type=jnp.float32) + bd_ref[...]
    out_ref[...] = logits.astype(out_ref.dtype)


def _pick_row_tile(n):
    if n >= 1024 and n % 256 == 0:
        return 256
    if n % 128 == 0:
        return 128
    return n  # small case: one block covering the full row extent


def _pick_vocab_tile(v):
    for t in (512, 256, 128):
        if v % t == 0:
            return t
    return v


def bert_mlm_head_forward(params, sequence_output, *, eps=1e-12,
                          compute_dtype=jnp.bfloat16):
    """sequence_output: (B, S, D) f32 -> prediction logits (B, S, V) f32."""
    B, S, D = sequence_output.shape
    V = params["wd"].shape[1]
    N = B * S
    x2d = sequence_output.reshape(N, D)

    tm = _pick_row_tile(N)
    tv = _pick_vocab_tile(V)
    grid = (N // tm, V // tv)

    wbytes = jnp.dtype(compute_dtype).itemsize
    # rough VMEM footprint (double-buffered pipelined operands + scratch)
    footprint = (2 * tm * D * 4 +            # x tiles
                 2 * D * D * wbytes +        # transform weight
                 2 * D * tv * wbytes +       # decoder weight tiles
                 2 * tm * tv * 4 +           # output tiles
                 tm * D * 4 +                # transform scratch
                 2 * (4 * D + 2 * tv) * 4)   # biases / gamma / beta
    vmem_limit = int(min(64 * 2**20, max(32 * 2**20, 1.3 * footprint)))

    cost = pl.CostEstimate(
        flops=2 * N * D * D + 2 * N * D * V,
        transcendentals=N * D,
        bytes_accessed=(N * D * 4 + D * D * wbytes + D * V * wbytes
                        + N * V * 4 + (4 * D + V) * 4),
    )

    out2d = pl.pallas_call(
        functools.partial(_mlm_head_kernel, eps=eps, compute_dtype=compute_dtype),
        out_shape=jax.ShapeDtypeStruct((N, V), jnp.float32),
        grid=grid,
        in_specs=[
            pl.BlockSpec((tm, D), lambda i, j: (i, 0)),   # x rows (resident across j)
            pl.BlockSpec((D, D), lambda i, j: (0, 0)),    # transform W
            pl.BlockSpec((1, D), lambda i, j: (0, 0)),    # transform b
            pl.BlockSpec((1, D), lambda i, j: (0, 0)),    # LN gamma
            pl.BlockSpec((1, D), lambda i, j: (0, 0)),    # LN beta
            pl.BlockSpec((D, tv), lambda i, j: (0, j)),   # decoder W tile
            pl.BlockSpec((1, tv), lambda i, j: (0, j)),   # decoder bias tile
        ],
        out_specs=pl.BlockSpec((tm, tv), lambda i, j: (i, j)),
        scratch_shapes=[pltpu.VMEM((tm, D), jnp.float32)],
        compiler_params=pltpu.CompilerParams(
            dimension_semantics=("parallel", "arbitrary"),
            vmem_limit_bytes=vmem_limit),
        cost_estimate=cost,
    )(x2d, params["wt"], params["bt"], params["gamma"], params["beta"],
      params["wd"], params["bd"])

    return out2d.reshape(B, S, V)


# ----------------------------------------------------------------------------
# parameters (shapes from the nn.Module __init__)
# ----------------------------------------------------------------------------
def init_params(key, *, vocab_size, d_model, compute_dtype=jnp.bfloat16,
                token_embedding_weight=None):
    k1, k2, k3, k4, k5, k6 = jax.random.split(key, 6)
    std = 0.02
    wt = jax.random.normal(k1, (d_model, d_model), jnp.float32) * std
    bt = jax.random.normal(k2, (1, d_model), jnp.float32) * std
    gamma = 1.0 + jax.random.normal(k3, (1, d_model), jnp.float32) * std
    beta = jax.random.normal(k4, (1, d_model), jnp.float32) * std
    if token_embedding_weight is not None:
        # weight tying: PyTorch decoder.weight is (V, D); we store (D, V)
        wd = jnp.asarray(token_embedding_weight, jnp.float32).T
    else:
        wd = jax.random.normal(k5, (d_model, vocab_size), jnp.float32) * std
    # PyTorch initializes decoder_bias to zeros; use small random values here so
    # the numerical check exercises the bias path of the kernel.
    bd = jax.random.normal(k6, (1, vocab_size), jnp.float32) * std
    return {
        "wt": wt.astype(compute_dtype),  # bf16 weights: half HBM traffic / VMEM
        "bt": bt,
        "gamma": gamma,
        "beta": beta,
        "wd": wd.astype(compute_dtype),
        "bd": bd,
    }


# ----------------------------------------------------------------------------
# pure-JAX reference (mirrors the kernel's bf16-matmul / f32-accumulate math)
# ----------------------------------------------------------------------------
def mlm_head_reference(params, sequence_output, *, eps=1e-12,
                       compute_dtype=jnp.bfloat16):
    B, S, D = sequence_output.shape
    x = sequence_output.reshape(B * S, D)
    h = jnp.dot(x.astype(compute_dtype), params["wt"].astype(compute_dtype),
                preferred_element_type=jnp.float32) + params["bt"]
    h = 0.5 * h * (1.0 + jax.lax.erf(h * _INV_SQRT2))   # exact GELU
    mean = jnp.mean(h, axis=-1, keepdims=True)
    var = jnp.mean(jnp.square(h - mean), axis=-1, keepdims=True)
    ln = (h - mean) * jax.lax.rsqrt(var + eps) * params["gamma"] + params["beta"]
    logits = jnp.dot(ln.astype(compute_dtype), params["wd"].astype(compute_dtype),
                     preferred_element_type=jnp.float32) + params["bd"]
    return logits.reshape(B, S, -1)


# ----------------------------------------------------------------------------
if __name__ == "__main__":
    vocab_size, d_model = 1024, 128
    B, S = 4, 64

    key = jax.random.PRNGKey(0)
    k_params, k_x = jax.random.split(key)

    params = init_params(k_params, vocab_size=vocab_size, d_model=d_model)
    sequence_output = jax.random.normal(k_x, (B, S, d_model), jnp.float32)

    logits = bert_mlm_head_forward(params, sequence_output)
    jax.block_until_ready(logits)

    assert logits.shape == (B, S, vocab_size)
    assert bool(jnp.all(jnp.isfinite(logits)))

    ref = mlm_head_reference(params, sequence_output)
    max_err = float(jnp.max(jnp.abs(logits - ref)))
    assert max_err < 2e-2, f"max abs error vs reference: {max_err}"

    print("KERNEL_OK")
</pallas_src>

<mosaic_0001>
module attributes {stable_mosaic.version = 11 : i64} {
  func.func @_mlm_head_kernel(%arg0: i32, %arg1: i32, %arg2: memref<128x128xf32, #tpu.memory_space<vmem>>, %arg3: memref<128x128xbf16, #tpu.memory_space<vmem>>, %arg4: memref<1x128xf32, #tpu.memory_space<vmem>>, %arg5: memref<1x128xf32, #tpu.memory_space<vmem>>, %arg6: memref<1x128xf32, #tpu.memory_space<vmem>>, %arg7: memref<128x512xbf16, #tpu.memory_space<vmem>>, %arg8: memref<1x512xf32, #tpu.memory_space<vmem>>, %arg9: memref<128x512xf32, #tpu.memory_space<vmem>>, %arg10: memref<128x128xf32, #tpu.memory_space<vmem>>) attributes {dimension_semantics = [#tpu.dimension_semantics<parallel>, #tpu.dimension_semantics<arbitrary>], iteration_bounds = array<i64: 2, 2>, scalar_prefetch = 0 : i64, scratch_operands = 1 : i64, tpu.core_type = #tpu.core_type<tc>, window_params = [{transform_indices = @transform_0, window_bounds = array<i64: 128, 128>}, {pipeline_mode = #tpu.pipeline_mode<synchronous>, transform_indices = @transform_1, window_bounds = array<i64: 128, 128>}, {pipeline_mode = #tpu.pipeline_mode<synchronous>, transform_indices = @transform_2, window_bounds = array<i64: 1, 128>}, {pipeline_mode = #tpu.pipeline_mode<synchronous>, transform_indices = @transform_3, window_bounds = array<i64: 1, 128>}, {pipeline_mode = #tpu.pipeline_mode<synchronous>, transform_indices = @transform_4, window_bounds = array<i64: 1, 128>}, {transform_indices = @transform_5, window_bounds = array<i64: 128, 512>}, {transform_indices = @transform_6, window_bounds = array<i64: 1, 512>}, {transform_indices = @transform_7, window_bounds = array<i64: 128, 512>}]} {
    %c0_i32 = arith.constant 0 : i32
    %0 = arith.cmpi eq, %arg1, %c0_i32 : i32
    %1 = arith.extui %0 : i1 to i32
    %c0_i32_0 = arith.constant 0 : i32
    %2 = arith.cmpi ne, %1, %c0_i32_0 : i32
    scf.if %2 {
      %c0_8 = arith.constant 0 : index
      %c0_9 = arith.constant 0 : index
      %11 = vector.load %arg2[%c0_8, %c0_9] : memref<128x128xf32, #tpu.memory_space<vmem>>, vector<128x128xf32>
      %12 = arith.truncf %11 : vector<128x128xf32> to vector<128x128xbf16>
      %c0_10 = arith.constant 0 : index
      %c0_11 = arith.constant 0 : index
      %13 = vector.load %arg3[%c0_10, %c0_11] : memref<128x128xbf16, #tpu.memory_space<vmem>>, vector<128x128xbf16>
      %cst_12 = arith.constant dense<0.000000e+00> : vector<128x128xf32>
      %14 = tpu.matmul %12, %13, %cst_12 {dimension_numbers = #tpu.dot_dimension_numbers<[1], [0], [0], [1], [0, 0, 1, 1], [], []>} : vector<128x128xbf16>, vector<128x128xbf16>, vector<128x128xf32> -> vector<128x128xf32>
      %c0_13 = arith.constant 0 : index
      %c0_14 = arith.constant 0 : index
      %15 = vector.load %arg4[%c0_13, %c0_14] : memref<1x128xf32, #tpu.memory_space<vmem>>, vector<1x128xf32>
      %16 = vector.broadcast %15 : vector<1x128xf32> to vector<128x128xf32>
      %17 = arith.addf %14, %16 : vector<128x128xf32>
      %cst_15 = arith.constant 5.000000e-01 : f32
      %18 = vector.broadcast %cst_15 : f32 to vector<128x128xf32>
      %19 = arith.mulf %18, %17 : vector<128x128xf32>
      %cst_16 = arith.constant 0.707106769 : f32
      %20 = vector.broadcast %cst_16 : f32 to vector<128x128xf32>
      %21 = arith.mulf %17, %20 : vector<128x128xf32>
      %22 = math.absf %21 : vector<128x128xf32>
      %cst_17 = arith.constant 0.327591091 : f32
      %23 = vector.broadcast %cst_17 : f32 to vector<128x128xf32>
      %24 = arith.mulf %23, %22 : vector<128x128xf32>
      %cst_18 = arith.constant 1.000000e+00 : f32
      %25 = vector.broadcast %cst_18 : f32 to vector<128x128xf32>
      %26 = arith.addf %25, %24 : vector<128x128xf32>
      %cst_19 = arith.constant 1.000000e+00 : f32
      %27 = vector.broadcast %cst_19 : f32 to vector<128x128xf32>
      %28 = arith.divf %27, %26 : vector<128x128xf32>
      %cst_20 = arith.constant 1.06140542 : f32
      %29 = vector.broadcast %cst_20 : f32 to vector<128x128xf32>
      %30 = arith.mulf %29, %28 : vector<128x128xf32>
      %cst_21 = arith.constant 1.45315206 : f32
      %31 = vector.broadcast %cst_21 : f32 to vector<128x128xf32>
      %32 = arith.subf %30, %31 : vector<128x128xf32>
      %33 = arith.mulf %32, %28 : vector<128x128xf32>
      %cst_22 = arith.constant 1.42141378 : f32
      %34 = vector.broadcast %cst_22 : f32 to vector<128x128xf32>
      %35 = arith.addf %33, %34 : vector<128x128xf32>
      %36 = arith.mulf %35, %28 : vector<128x128xf32>
      %cst_23 = arith.constant 0.284496725 : f32
      %37 = vector.broadcast %cst_23 : f32 to vector<128x128xf32>
      %38 = arith.subf %36, %37 : vector<128x128xf32>
      %39 = arith.mulf %38, %28 : vector<128x128xf32>
      %cst_24 = arith.constant 0.254829586 : f32
      %40 = vector.broadcast %cst_24 : f32 to vector<128x128xf32>
      %41 = arith.addf %39, %40 : vector<128x128xf32>
      %42 = arith.mulf %41, %28 : vector<128x128xf32>
      %cst_25 = arith.constant 0.000000e+00 : f32
      %43 = vector.broadcast %cst_25 : f32 to vector<128x128xf32>
      %44 = arith.subf %43, %22 : vector<128x128xf32>
      %45 = arith.mulf %44, %22 : vector<128x128xf32>
      %46 = math.exp %45 : vector<128x128xf32>
      %47 = arith.mulf %42, %46 : vector<128x128xf32>
      %cst_26 = arith.constant 1.000000e+00 : f32
      %48 = vector.broadcast %cst_26 : f32 to vector<128x128xf32>
      %49 = arith.subf %48, %47 : vector<128x128xf32>
      %cst_27 = arith.constant 0.000000e+00 : f32
      %50 = vector.broadcast %cst_27 : f32 to vector<128x128xf32>
      %51 = arith.cmpf oge, %21, %50 : vector<128x128xf32>
      %cst_28 = arith.constant 0.000000e+00 : f32
      %52 = vector.broadcast %cst_28 : f32 to vector<128x128xf32>
      %53 = arith.subf %52, %49 : vector<128x128xf32>
      %54 = arith.select %51, %49, %53 : vector<128x128xi1>, vector<128x128xf32>
      %cst_29 = arith.constant 1.000000e+00 : f32
      %55 = vector.broadcast %cst_29 : f32 to vector<128x128xf32>
      %56 = arith.addf %55, %54 : vector<128x128xf32>
      %57 = arith.mulf %19, %56 : vector<128x128xf32>
      %c0_30 = arith.constant 0 : index
      %c0_31 = arith.constant 0 : index
      %58 = vector.load %arg5[%c0_30, %c0_31] : memref<1x128xf32, #tpu.memory_space<vmem>>, vector<1x128xf32>
      %c0_32 = arith.constant 0 : index
      %c0_33 = arith.constant 0 : index
      %59 = vector.load %arg6[%c0_32, %c0_33] : memref<1x128xf32, #tpu.memory_space<vmem>>, vector<1x128xf32>
      %cst_34 = arith.constant dense<0.000000e+00> : vector<128xf32>
      %60 = vector.multi_reduction <add>, %57, %cst_34 [1] : vector<128x128xf32> to vector<128xf32>
      %61 = vector.shape_cast %60 : vector<128xf32> to vector<128x1xf32>
      %cst_35 = arith.constant 1.280000e+02 : f32
      %62 = vector.broadcast %cst_35 : f32 to vector<128x1xf32>
      %63 = arith.divf %61, %62 : vector<128x1xf32>
      %64 = vector.broadcast %63 : vector<128x1xf32> to vector<128x128xf32>
      %65 = arith.subf %57, %64 : vector<128x128xf32>
      %66 = arith.mulf %65, %65 : vector<128x128xf32>
      %cst_36 = arith.constant dense<0.000000e+00> : vector<128xf32>
      %67 = vector.multi_reduction <add>, %66, %cst_36 [1] : vector<128x128xf32> to vector<128xf32>
      %68 = vector.shape_cast %67 : vector<128xf32> to vector<128x1xf32>
      %cst_37 = arith.constant 1.280000e+02 : f32
      %69 = vector.broadcast %cst_37 : f32 to vector<128x1xf32>
      %70 = arith.divf %68, %69 : vector<128x1xf32>
      %71 = vector.broadcast %63 : vector<128x1xf32> to vector<128x128xf32>
      %72 = arith.subf %57, %71 : vector<128x128xf32>
      %cst_38 = arith.constant 9.99999996E-13 : f32
      %73 = vector.broadcast %cst_38 : f32 to vector<128x1xf32>
      %74 = arith.addf %70, %73 : vector<128x1xf32>
      %75 = math.rsqrt %74 : vector<128x1xf32>
      %76 = vector.broadcast %75 : vector<128x1xf32> to vector<128x128xf32>
      %77 = arith.mulf %72, %76 : vector<128x128xf32>
      %78 = vector.broadcast %58 : vector<1x128xf32> to vector<128x128xf32>
      %79 = arith.mulf %77, %78 : vector<128x128xf32>
      %80 = vector.broadcast %59 : vector<1x128xf32> to vector<128x128xf32>
      %81 = arith.addf %79, %80 : vector<128x128xf32>
      %c0_39 = arith.constant 0 : index
      %c0_40 = arith.constant 0 : index
      %82 = vector.load %arg10[%c0_39, %c0_40] : memref<128x128xf32, #tpu.memory_space<vmem>>, vector<128x128xf32>
      tpu.vector_store %arg10[%c0_39, %c0_40], %81 {strides = array<i32>} : memref<128x128xf32, #tpu.memory_space<vmem>>, vector<128x128xf32>,
    } else {
    }
    %c0 = arith.constant 0 : index
    %c0_1 = arith.constant 0 : index
    %3 = vector.load %arg10[%c0, %c0_1] : memref<128x128xf32, #tpu.memory_space<vmem>>, vector<128x128xf32>
    %4 = arith.truncf %3 : vector<128x128xf32> to vector<128x128xbf16>
    %c0_2 = arith.constant 0 : index
    %c0_3 = arith.constant 0 : index
    %5 = vector.load %arg7[%c0_2, %c0_3] : memref<128x512xbf16, #tpu.memory_space<vmem>>, vector<128x512xbf16>
    %cst = arith.constant dense<0.000000e+00> : vector<128x512xf32>
    %6 = tpu.matmul %4, %5, %cst {dimension_numbers = #tpu.dot_dimension_numbers<[1], [0], [0], [1], [0, 0, 1, 1], [], []>} : vector<128x128xbf16>, vector<128x512xbf16>, vector<128x512xf32> -> vector<128x512xf32>
    %c0_4 = arith.constant 0 : index
    %c0_5 = arith.constant 0 : index
    %7 = vector.load %arg8[%c0_4, %c0_5] : memref<1x512xf32, #tpu.memory_space<vmem>>, vector<1x512xf32>
    %8 = vector.broadcast %7 : vector<1x512xf32> to vector<128x512xf32>
    %9 = arith.addf %6, %8 : vector<128x512xf32>
    %c0_6 = arith.constant 0 : index
    %c0_7 = arith.constant 0 : index
    %10 = vector.load %arg9[%c0_6, %c0_7] : memref<128x512xf32, #tpu.memory_space<vmem>>, vector<128x512xf32>
    tpu.vector_store %arg9[%c0_6, %c0_7], %9 {strides = array<i32>} : memref<128x512xf32, #tpu.memory_space<vmem>>, vector<128x512xf32>,
    return
  }
  func.func @transform_0(%arg0: i32, %arg1: i32) -> (i32, i32) {
    %c0_i32 = arith.constant 0 : i32
    %c0_i32_0 = arith.constant 0 : i32
    return %arg0, %c0_i32 : i32, i32
  }
  func.func @transform_1(%arg0: i32, %arg1: i32) -> (i32, i32) {
    %c0_i32 = arith.constant 0 : i32
    %c0_i32_0 = arith.constant 0 : i32
    %c0_i32_1 = arith.constant 0 : i32
    return %c0_i32, %c0_i32_0 : i32, i32
  }
  func.func @transform_2(%arg0: i32, %arg1: i32) -> (i32, i32) {
    %c0_i32 = arith.constant 0 : i32
    %c0_i32_0 = arith.constant 0 : i32
    %c0_i32_1 = arith.constant 0 : i32
    return %c0_i32, %c0_i32_0 : i32, i32
  }
  func.func @transform_3(%arg0: i32, %arg1: i32) -> (i32, i32) {
    %c0_i32 = arith.constant 0 : i32
    %c0_i32_0 = arith.constant 0 : i32
    %c0_i32_1 = arith.constant 0 : i32
    return %c0_i32, %c0_i32_0 : i32, i32
  }
  func.func @transform_4(%arg0: i32, %arg1: i32) -> (i32, i32) {
    %c0_i32 = arith.constant 0 : i32
    %c0_i32_0 = arith.constant 0 : i32
    %c0_i32_1 = arith.constant 0 : i32
    return %c0_i32, %c0_i32_0 : i32, i32
  }
  func.func @transform_5(%arg0: i32, %arg1: i32) -> (i32, i32) {
    %c0_i32 = arith.constant 0 : i32
    %c0_i32_0 = arith.constant 0 : i32
    return %c0_i32, %arg1 : i32, i32
  }
  func.func @transform_6(%arg0: i32, %arg1: i32) -> (i32, i32) {
    %c0_i32 = arith.constant 0 : i32
    %c0_i32_0 = arith.constant 0 : i32
    return %c0_i32, %arg1 : i32, i32
  }
  func.func @transform_7(%arg0: i32, %arg1: i32) -> (i32, i32) {
    %c0_i32 = arith.constant 0 : i32
    return %arg0, %arg1 : i32, i32
  }
}

</mosaic_0001>

<llo_original>
// kernel: tpu_custom_call.1
$region0: #{tpu_custom_call.1}
  #allocation0 [shape = 'u32[]', space=smem, size = 0x4, offset = 0x4, fixed_abs, tag = 'smem constant byte address 0x4 - core index']
  #allocation1 [shape = 'u32[144,128]{1,0:T(1,128)}', space=vmem, size = 0x12000, scoped, tag = 'internal scratch']
  #allocation2 [shape = 'f32[128,128]{1,0:T(8,128)}', space=vmem, size = 0x10000, scoped, tag = 'scratch operand']
  %s0 = inlined_call_operand.hbm [shape: f32[256,128], index: 0, kind: input, shape index: {}]
  %s1 = inlined_call_operand.hbm [shape: bf16[128,128], index: 1, kind: input, shape index: {}]
  %s2 = inlined_call_operand.vmem [shape: f32[1,128], index: 2, kind: input, shape index: {}]
  %s3 = inlined_call_operand.vmem [shape: f32[1,128], index: 3, kind: input, shape index: {}]
  %s4 = inlined_call_operand.vmem [shape: f32[1,128], index: 4, kind: input, shape index: {}]
  %s5 = inlined_call_operand.hbm [shape: bf16[128,1024], index: 5, kind: input, shape index: {}]
  %s6 = inlined_call_operand.vmem [shape: f32[1,1024], index: 6, kind: input, shape index: {}]
  %s7 = inlined_call_operand.hbm [shape: f32[256,1024], index: 7, kind: output, shape index: {}]
  %s8 = sld [smem:[#allocation0]]
  $region77: #{tpu_custom_call.1} parent=0
    _
  %s10 = ssub.s32 1, %s8
  %s11 = scalar_select 0, %s10, %s8
  $region1: #{tpu_custom_call.1} parent=0
    #allocation3 [shape = 'u8[131072]{0}', space=vmem, size = 0x20000, scoped, tag = 'input window, operand 0']
    #allocation4 [shape = 's32[2]{0}', space=sflag, size = 0x8, scoped, tag = 'scoped memory for tpu_custom_call.1']
    #allocation5 [shape = 's32[2]{0}', space=sflag, size = 0x8, scoped, tag = 'scoped memory for tpu_custom_call.1']
    #allocation6 [shape = 'u8[32768]{0}', space=vmem, size = 0x8000, scoped, tag = 'input window, operand 1, single buffered']
    #allocation7 [shape = 's32[1]{0}', space=sflag, size = 0x4, scoped, tag = 'scoped memory for tpu_custom_call.1']
    #allocation8 [shape = 'u8[262144]{0}', space=vmem, size = 0x40000, scoped, tag = 'input window, operand 5']
    #allocation9 [shape = 'u8[524288]{0}', space=vmem, size = 0x80000, scoped, tag = 'output window, operand 0']
    %12 = vsyncpa [#allocation4], 0
    %s13 = scalar_lea.sflag [#allocation4], 1
    %14 = vsyncpa %s13, 0
    %15 = vsyncpa [#allocation7], 0
    %16 = vsyncpa [#allocation5], 0
    %s17 = scalar_lea.sflag [#allocation5], 1
    %18 = vsyncpa %s17, 0
    loop: start=0, step=1, limit=6
    $region2: #{tpu_custom_call.1} parent=1 // loop_pre_header
      _
    $region3: #{tpu_custom_call.1} parent=1 // loop_header
      %s20 = sphi 0, %s24
      %p21 = scmp.ge.s32.totalorder %s20, 6
      %s27 = sphi 0, %s39
      %s28 = sphi 0, %s35
      %s29 = sphi 0, %s27
      %s30 = sphi 0, %s28
      %s31 = sphi 0, %s29
      %s32 = sphi 0, %s30
      %s42 = sphi 0, %s44
      %s45 = sphi 0, %s42
      %s46 = sphi 0, %s45
      %s62 = sphi 0, %s46
      %s66 = sphi 0, %s66
      %s68 = sphi 0, %s66
      %s69 = sphi 0, %s68
      %s83 = sphi 0, %s69
      %s87 = sphi 0, %s87
      %s89 = sphi 0, %s87
      %s90 = sphi 0, %s89
      %s104 = sphi 0, %s90
      %s108 = sphi 0, %s108
      %s110 = sphi 0, %s108
      %s111 = sphi 0, %s110
      %s125 = sphi 0, %s111
      %s129 = sphi 0, %s129
      %s131 = sphi 0, %s129
      %s132 = sphi 0, %s131
      %s146 = sphi 0, %s132
      %s152 = sphi 0, %s154
      %s155 = sphi 0, %s152
      %s156 = sphi 0, %s155
      %s172 = sphi 0, %s156
      %s178 = sphi 0, %s180
      %s181 = sphi 0, %s178
      %s182 = sphi 0, %s181
      %s198 = sphi 0, %s182
      %s206 = sphi 0, %s208
      %s209 = sphi 0, %s206
      %s210 = sphi 0, %s209
      %s226 = sphi 0, %s210
    $region4: #{tpu_custom_call.1} parent=1 // loop_header_branch
      %23 = sbr.rel (%p21) target = $region8
    $region5: #{tpu_custom_call.1} parent=1 // loop_body
      %s25 = ssub.s32 %s20, 1
      %s26 = ssub.s32 %s20, 2
      %s33 = sadd.s32 1, %s28
      %p34 = scmp.ge.s32.totalorder %s33, 2
      %s35 = scalar_select %p34, 0, %s33
      %s36 = sadd.s32 1, %s27
      %s37 = scalar_select %p34, %s36, %s27
      %p38 = scmp.ge.s32.totalorder %s37, 2
      %s39 = scalar_select %p38, 0, %s37
      %s40 = ssub.s32 %s27, %s39
      %p41 = scmp.eq.s32.totalorder %s40, 0
      %s43 = sadd.s32 %s42, 1
      %s44 = scalar_select %p41, %s42, %s43
      %p47 = pneg %p41
      %p48 = scmp.eq.s32.totalorder %s20, 3
      %p49 = por %p47, %p48
      %p50 = scmp.ne.s32.totalorder %s42, %s45
      %p51 = scmp.eq.s32.totalorder %s20, 0
      %p52 = por %p50, %p51
      %p53 = scmp.ne.s32.totalorder %s42, %s45
      %p54 = scmp.eq.s32.totalorder %s25, 3
      %p55 = por %p53, %p54
      %p56 = scmp.ne.s32.totalorder %s45, %s46
      %p57 = scmp.eq.s32.totalorder %s25, 0
      %p58 = por %p56, %p57
      %p59 = scmp.ne.s32.totalorder %s45, %s46
      %p60 = scmp.eq.s32.totalorder %s26, 3
      %p61 = por %p59, %p60
      %p63 = scmp.ne.s32.totalorder %s46, %s62
      %p64 = scmp.eq.s32.totalorder %s26, 0
      %p65 = por %p63, %p64
      %s67 = sadd.s32 %s66, 1
      %p70 = scmp.eq.s32.totalorder %s20, 3
      %p71 = scmp.ne.s32.totalorder %s66, %s68
      %p72 = scmp.eq.s32.totalorder %s20, 0
      %p73 = por %p71, %p72
      %p74 = scmp.ne.s32.totalorder %s66, %s68
      %p75 = scmp.eq.s32.totalorder %s25, 3
      %p76 = por %p74, %p75
      %p77 = scmp.ne.s32.totalorder %s68, %s69
      %p78 = scmp.eq.s32.totalorder %s25, 0
      %p79 = por %p77, %p78
      %p80 = scmp.ne.s32.totalorder %s68, %s69
      %p81 = scmp.eq.s32.totalorder %s26, 3
      %p82 = por %p80, %p81
      %p84 = scmp.ne.s32.totalorder %s69, %s83
      %p85 = scmp.eq.s32.totalorder %s26, 0
      %p86 = por %p84, %p85
      %s88 = sadd.s32 %s87, 1
      %p91 = scmp.eq.s32.totalorder %s20, 3
      %p92 = scmp.ne.s32.totalorder %s87, %s89
      %p93 = scmp.eq.s32.totalorder %s20, 0
      %p94 = por %p92, %p93
      %p95 = scmp.ne.s32.totalorder %s87, %s89
      %p96 = scmp.eq.s32.totalorder %s25, 3
      %p97 = por %p95, %p96
      %p98 = scmp.ne.s32.totalorder %s89, %s90
      %p99 = scmp.eq.s32.totalorder %s25, 0
      %p100 = por %p98, %p99
      %p101 = scmp.ne.s32.totalorder %s89, %s90
      %p102 = scmp.eq.s32.totalorder %s26, 3
      %p103 = por %p101, %p102
      %p105 = scmp.ne.s32.totalorder %s90, %s104
      %p106 = scmp.eq.s32.totalorder %s26, 0
      %p107 = por %p105, %p106
      %s109 = sadd.s32 %s108, 1
      %p112 = scmp.eq.s32.totalorder %s20, 3
      %p113 = scmp.ne.s32.totalorder %s108, %s110
      %p114 = scmp.eq.s32.totalorder %s20, 0
      %p115 = por %p113, %p114
      %p116 = scmp.ne.s32.totalorder %s108, %s110
      %p117 = scmp.eq.s32.totalorder %s25, 3
      %p118 = por %p116, %p117
      %p119 = scmp.ne.s32.totalorder %s110, %s111
      %p120 = scmp.eq.s32.totalorder %s25, 0
      %p121 = por %p119, %p120
      %p122 = scmp.ne.s32.totalorder %s110, %s111
      %p123 = scmp.eq.s32.totalorder %s26, 3
      %p124 = por %p122, %p123
      %p126 = scmp.ne.s32.totalorder %s111, %s125
      %p127 = scmp.eq.s32.totalorder %s26, 0
      %p128 = por %p126, %p127
      %s130 = sadd.s32 %s129, 1
      %p133 = scmp.eq.s32.totalorder %s20, 3
      %p134 = scmp.ne.s32.totalorder %s129, %s131
      %p135 = scmp.eq.s32.totalorder %s20, 0
      %p136 = por %p134, %p135
      %p137 = scmp.ne.s32.totalorder %s129, %s131
      %p138 = scmp.eq.s32.totalorder %s25, 3
      %p139 = por %p137, %p138
      %p140 = scmp.ne.s32.totalorder %s131, %s132
      %p141 = scmp.eq.s32.totalorder %s25, 0
      %p142 = por %p140, %p141
      %p143 = scmp.ne.s32.totalorder %s131, %s132
      %p144 = scmp.eq.s32.totalorder %s26, 3
      %p145 = por %p143, %p144
      %p147 = scmp.ne.s32.totalorder %s132, %s146
      %p148 = scmp.eq.s32.totalorder %s26, 0
      %p149 = por %p147, %p148
      %s150 = ssub.s32 %s28, %s35
      %p151 = scmp.eq.s32.totalorder %s150, 0
      %s153 = sadd.s32 %s152, 1
      %s154 = scalar_select %p151, %s152, %s153
      %p157 = pneg %p151
      %p158 = scmp.eq.s32.totalorder %s20, 3
      %p159 = por %p157, %p158
      %p160 = scmp.ne.s32.totalorder %s152, %s155
      %p161 = scmp.eq.s32.totalorder %s20, 0
      %p162 = por %p160, %p161
      %p163 = scmp.ne.s32.totalorder %s152, %s155
      %p164 = scmp.eq.s32.totalorder %s25, 3
      %p165 = por %p163, %p164
      %p166 = scmp.ne.s32.totalorder %s155, %s156
      %p167 = scmp.eq.s32.totalorder %s25, 0
      %p168 = por %p166, %p167
      %p169 = scmp.ne.s32.totalorder %s155, %s156
      %p170 = scmp.eq.s32.totalorder %s26, 3
      %p171 = por %p169, %p170
      %p173 = scmp.ne.s32.totalorder %s156, %s172
      %p174 = scmp.eq.s32.totalorder %s26, 0
      %p175 = por %p173, %p174
      %s176 = ssub.s32 %s28, %s35
      %p177 = scmp.eq.s32.totalorder %s176, 0
      %s179 = sadd.s32 %s178, 1
      %s180 = scalar_select %p177, %s178, %s179
      %p183 = pneg %p177
      %p184 = scmp.eq.s32.totalorder %s20, 3
      %p185 = por %p183, %p184
      %p186 = scmp.ne.s32.totalorder %s178, %s181
      %p187 = scmp.eq.s32.totalorder %s20, 0
      %p188 = por %p186, %p187
      %p189 = scmp.ne.s32.totalorder %s178, %s181
      %p190 = scmp.eq.s32.totalorder %s25, 3
      %p191 = por %p189, %p190
      %p192 = scmp.ne.s32.totalorder %s181, %s182
      %p193 = scmp.eq.s32.totalorder %s25, 0
      %p194 = por %p192, %p193
      %p195 = scmp.ne.s32.totalorder %s181, %s182
      %p196 = scmp.eq.s32.totalorder %s26, 3
      %p197 = por %p195, %p196
      %p199 = scmp.ne.s32.totalorder %s182, %s198
      %p200 = scmp.eq.s32.totalorder %s26, 0
      %p201 = por %p199, %p200
      %s202 = ssub.s32 %s27, %s39
      %s203 = ssub.s32 %s28, %s35
      %s204 = sor.u32 %s202, %s203
      %p205 = scmp.eq.s32.totalorder %s204, 0
      %s207 = sadd.s32 %s206, 1
      %s208 = scalar_select %p205, %s206, %s207
      %p211 = pneg %p205
      %p212 = scmp.eq.s32.totalorder %s20, 3
      %p213 = por %p211, %p212
      %p214 = scmp.ne.s32.totalorder %s206, %s209
      %p215 = scmp.eq.s32.totalorder %s20, 0
      %p216 = por %p214, %p215
      %p217 = scmp.ne.s32.totalorder %s206, %s209
      %p218 = scmp.eq.s32.totalorder %s25, 3
      %p219 = por %p217, %p218
      %p220 = scmp.ne.s32.totalorder %s209, %s210
      %p221 = scmp.eq.s32.totalorder %s25, 0
      %p222 = por %p220, %p221
      %p223 = scmp.ne.s32.totalorder %s209, %s210
      %p224 = scmp.eq.s32.totalorder %s26, 3
      %p225 = por %p223, %p224
      %p227 = scmp.ne.s32.totalorder %s210, %s226
      %p228 = scmp.eq.s32.totalorder %s26, 0
      %p229 = por %p227, %p228
      %p230 = scmp.le.s32.totalorder 1, %s20
      %p231 = scmp.lt.s32.totalorder %s20, 5
      %p232 = pnand %p230, %p231
      %p233 = pneg %p232
      // Predicated region
      $region9: #{tpu_custom_call.1} parent=5 // pred_check
        _
      $region10: #{tpu_custom_call.1} parent=5 // pred_check_branch
        %235 = sbr.rel (%p232) target = $region12
      $region11: #{tpu_custom_call.1} parent=5 // pred_region
        %s236 = ssub.s32 %s20, 1
        // Predicated region
        $region13: #{tpu_custom_call.1} parent=11 // pred_check
          %p237 = pneg %p79
        $region14: #{tpu_custom_call.1} parent=11 // pred_check_branch
          %239 = sbr.rel (%p237) target = $region16
        $region15: #{tpu_custom_call.1} parent=11 // pred_region
          %s241 = ssub.s32 1024, 1024
          %242 = vsyncadd [#allocation7], %s241
          %s243 = sshll.u32 [#allocation6], 4
          %s244 = int_to_ptr.vmem [resolvable:$true] %s243
          %249 = dma.hbm_to_vmem [thread:$0]  %s1, 1024, %s244, [#allocation7], 64, 64, 4
        $region16: #{tpu_custom_call.1} parent=11 // pred_fallthru
          _
        // Predicated region
        $region17: #{tpu_custom_call.1} parent=11 // pred_check
          %p250 = pneg %p100
        $region18: #{tpu_custom_call.1} parent=11 // pred_check_branch
          %252 = sbr.rel (%p250) target = $region20
        $region19: #{tpu_custom_call.1} parent=11 // pred_region
          _
        $region20: #{tpu_custom_call.1} parent=11 // pred_fallthru
          _
        // Predicated region
        $region21: #{tpu_custom_call.1} parent=11 // pred_check
          %p253 = pneg %p121
        $region22: #{tpu_custom_call.1} parent=11 // pred_check_branch
          %255 = sbr.rel (%p253) target = $region24
        $region23: #{tpu_custom_call.1} parent=11 // pred_region
          _
        $region24: #{tpu_custom_call.1} parent=11 // pred_fallthru
          _
        // Predicated region
        $region25: #{tpu_custom_call.1} parent=11 // pred_check
          %p256 = pneg %p142
        $region26: #{tpu_custom_call.1} parent=11 // pred_check_branch
          %258 = sbr.rel (%p256) target = $region28
        $region27: #{tpu_custom_call.1} parent=11 // pred_region
          _
        $region28: #{tpu_custom_call.1} parent=11 // pred_fallthru
          _
      $region12: #{tpu_custom_call.1} parent=5 // pred_fallthru
        _
      %p259 = scmp.lt.s32.totalorder %s20, 4
      // Predicated region
      $region29: #{tpu_custom_call.1} parent=5 // pred_check
        %p260 = pneg %p259
      $region30: #{tpu_custom_call.1} parent=5 // pred_check_branch
        %262 = sbr.rel (%p260) target = $region32
      $region31: #{tpu_custom_call.1} parent=5 // pred_region
        // Predicated region
        $region33: #{tpu_custom_call.1} parent=31 // pred_check
          %p263 = pneg %p52
        $region34: #{tpu_custom_call.1} parent=31 // pred_check_branch
          %265 = sbr.rel (%p263) target = $region36
        $region35: #{tpu_custom_call.1} parent=31 // pred_region
          %s266 = sand.u32 %s20, 1
          %s267 = scalar_lea.sflag [#allocation4], %s266
          %s268 = sand.u32 %s42, 1
          %s269 = smul.addr %s268, 128
          %s270 = scalar_lea.vmem [#allocation3], %s269
          %s271 = smul.u32 16, %s27
          %s273 = ssub.s32 2048, 2048
          %274 = vsyncadd %s267, %s273
          %s275 = smul.addr %s271, 128
          %s276 = scalar_lea.hbm %s0, %s275
          %s277 = sshll.u32 %s270, 4
          %s278 = int_to_ptr.vmem [resolvable:$true] %s277
          %283 = dma.hbm_to_vmem [thread:$0]  %s276, 2048, %s278, %s267, 128, 128, 8
        $region36: #{tpu_custom_call.1} parent=31 // pred_fallthru
          _
        // Predicated region
        $region37: #{tpu_custom_call.1} parent=31 // pred_check
          %p284 = pneg %p162
        $region38: #{tpu_custom_call.1} parent=31 // pred_check_branch
          %286 = sbr.rel (%p284) target = $region40
        $region39: #{tpu_custom_call.1} parent=31 // pred_region
          %s287 = sand.u32 %s20, 1
          %s288 = scalar_lea.sflag [#allocation4], %s287
          %s289 = sand.u32 %s152, 1
          %s290 = smul.addr %s289, 256
          %s291 = scalar_lea.vmem [#allocation8], %s290
          %s292 = smul.u32 4, %s28
          %s294 = ssub.s32 4096, 4096
          %295 = vsyncadd %s288, %s294
          %s296 = smul.addr %s292, 64
          %s297 = scalar_lea.hbm %s5, %s296
          %s298 = sshll.u32 %s291, 4
          %s299 = int_to_ptr.vmem [resolvable:$true] %s298
          %304 = dma.hbm_to_vmem [thread:$0]  %s297, 4096, %s299, %s288, 512, 256, 16
        $region40: #{tpu_custom_call.1} parent=31 // pred_fallthru
          _
        // Predicated region
        $region41: #{tpu_custom_call.1} parent=31 // pred_check
          %p305 = pneg %p188
        $region42: #{tpu_custom_call.1} parent=31 // pred_check_branch
          %307 = sbr.rel (%p305) target = $region44
        $region43: #{tpu_custom_call.1} parent=31 // pred_region
          %s308 = smul.u32 4, %s28
          %p309 = scmp.lt.s32.totalorder %s308, 7
          %s310 = scalar_select %p309, %s308, 7
          %s311 = scalar_lea.vmem %s6, %s310
          %s312 = smul.u32 4, %s28
        $region44: #{tpu_custom_call.1} parent=31 // pred_fallthru
          _
      $region32: #{tpu_custom_call.1} parent=5 // pred_fallthru
        _
      %p313 = scmp.le.s32.totalorder 1, %s20
      %p314 = scmp.lt.s32.totalorder %s20, 5
      %p315 = pnand %p313, %p314
      %p316 = pneg %p315
      // Predicated region
      $region45: #{tpu_custom_call.1} parent=5 // pred_check
        _
      $region46: #{tpu_custom_call.1} parent=5 // pred_check_branch
        %318 = sbr.rel (%p315) target = $region48
      $region47: #{tpu_custom_call.1} parent=5 // pred_region
        %s319 = ssub.s32 %s20, 1
        %s320 = sand.u32 %s25, 1
        %s321 = scalar_lea.sflag [#allocation4], %s320
        %s322 = sand.u32 %s45, 1
        %s323 = smul.addr %s322, 128
        %s324 = scalar_lea.vmem [#allocation3], %s323
        // Predicated region
        $region49: #{tpu_custom_call.1} parent=47 // pred_check
          %p325 = pneg %p58
        $region50: #{tpu_custom_call.1} parent=47 // pred_check_branch
          %327 = sbr.rel (%p325) target = $region52
        $region51: #{tpu_custom_call.1} parent=47 // pred_region
          %328 = dma.done %s321, 2048
        $region52: #{tpu_custom_call.1} parent=47 // pred_fallthru
          _
        // Predicated region
        $region53: #{tpu_custom_call.1} parent=47 // pred_check
          %p329 = pneg %p79
        $region54: #{tpu_custom_call.1} parent=47 // pred_check_branch
          %331 = sbr.rel (%p329) target = $region56
        $region55: #{tpu_custom_call.1} parent=47 // pred_region
          %332 = dma.done [#allocation7], 1024
        $region56: #{tpu_custom_call.1} parent=47 // pred_fallthru
          _
        %s333 = sand.u32 %s25, 1
        %s334 = scalar_lea.sflag [#allocation4], %s333
        %s335 = sand.u32 %s155, 1
        %s336 = smul.addr %s335, 256
        %s337 = scalar_lea.vmem [#allocation8], %s336
        // Predicated region
        $region57: #{tpu_custom_call.1} parent=47 // pred_check
          %p338 = pneg %p168
        $region58: #{tpu_custom_call.1} parent=47 // pred_check_branch
          %340 = sbr.rel (%p338) target = $region60
        $region59: #{tpu_custom_call.1} parent=47 // pred_region
          %341 = dma.done %s334, 4096
        $region60: #{tpu_custom_call.1} parent=47 // pred_fallthru
          _
        %s342 = sand.u32 %s25, 1
        %s343 = scalar_lea.sflag [#allocation4], %s342
        %s344 = sand.u32 %s45, 1
        %s345 = smul.addr %s344, 128
        %s346 = scalar_lea.vmem [#allocation3], %s345
        %p347 = pneg %p58
        %p348 = pneg %p55
        %p349 = pneg %p79
        %p350 = pneg %p76
        %p351 = pneg %p100
        %p352 = pneg %p97
        %p353 = pneg %p121
        %p354 = pneg %p118
        %p355 = pneg %p142
        %p356 = pneg %p139
        %s357 = sand.u32 %s25, 1
        %s358 = scalar_lea.sflag [#allocation4], %s357
        %s359 = sand.u32 %s155, 1
        %s360 = smul.addr %s359, 256
        %s361 = scalar_lea.vmem [#allocation8], %s360
        %p362 = pneg %p168
        %p363 = pneg %p165
        %s364 = smul.u32 4, %s30
        %p365 = scmp.lt.s32.totalorder %s364, 7
        %s366 = scalar_select %p365, %s364, 7
        %s367 = scalar_lea.vmem %s6, %s366
        %p368 = pneg %p194
        %p369 = pneg %p191
        %p370 = pneg %p222
        %p371 = pneg %p219
        %s372 = sand.u32 %s209, 1
        %s373 = scalar_lea.sflag [#allocation5], %s372
        %s374 = sand.u32 %s209, 1
        %s375 = smul.addr %s374, 512
        %s376 = scalar_lea.vmem [#allocation9], %s375
        %s377 = smul.u32 16, %s29
        %s378 = smul.u32 4, %s30
        %s379 = smul.u32 4, %s30
        %p380 = scmp.lt.s32.totalorder %s379, 7
        %s381 = scalar_select %p380, %s379, 7
        %s382 = scalar_lea.vmem %s6, %s381
        %s383 = smul.u32 4, %s30
        %s384 = smul.u32 16, %s29
        %s385 = smul.u32 4, %s30
        %p387 = scmp.eq.s32.totalorder %s30, 0
        // Predicated region
        $region61: #{tpu_custom_call.1} parent=47 // pred_check
          %p388 = pneg %p387
        $region62: #{tpu_custom_call.1} parent=47 // pred_check_branch
          %390 = sbr.rel (%p388) target = $region64
        $region63: #{tpu_custom_call.1} parent=47 // pred_region
          %v391 = vld [vmem:[%s324] sm:$0xff]
          %v392 = vld [vmem:[%s324 + $0x8] sm:$0xff]
          %v393 = vld [vmem:[%s324 + $0x10] sm:$0xff]
          %v394 = vld [vmem:[%s324 + $0x18] sm:$0xff]
          %v395 = vld [vmem:[%s324 + $0x20] sm:$0xff]
          %v396 = vld [vmem:[%s324 + $0x28] sm:$0xff]
          %v397 = vld [vmem:[%s324 + $0x30] sm:$0xff]
          %v398 = vld [vmem:[%s324 + $0x38] sm:$0xff]
          %v399 = vld [vmem:[%s324 + $0x40] sm:$0xff]
          %v400 = vld [vmem:[%s324 + $0x48] sm:$0xff]
          %v401 = vld [vmem:[%s324 + $0x50] sm:$0xff]
          %v402 = vld [vmem:[%s324 + $0x58] sm:$0xff]
          %v403 = vld [vmem:[%s324 + $0x60] sm:$0xff]
          %v404 = vld [vmem:[%s324 + $0x68] sm:$0xff]
          %v405 = vld [vmem:[%s324 + $0x70] sm:$0xff]
          %v406 = vld [vmem:[%s324 + $0x78] sm:$0xff]
          %v407 = vpack.c.bf16 %v392, %v391
          %v408 = vpack.c.bf16 %v394, %v393
          %v409 = vpack.c.bf16 %v396, %v395
          %v410 = vpack.c.bf16 %v398, %v397
          %v411 = vpack.c.bf16 %v400, %v399
          %v412 = vpack.c.bf16 %v402, %v401
          %v413 = vpack.c.bf16 %v404, %v403
          %v414 = vpack.c.bf16 %v406, %v405
          %v415 = vld [vmem:[#allocation6] sm:$0xf]
          %v416 = vld [vmem:[#allocation6 + $0x4] sm:$0xf]
          %v417 = vld [vmem:[#allocation6 + $0x8] sm:$0xf]
          %v418 = vld [vmem:[#allocation6 + $0xc] sm:$0xf]
          %v419 = vld [vmem:[#allocation6 + $0x10] sm:$0xf]
          %v420 = vld [vmem:[#allocation6 + $0x14] sm:$0xf]
          %v421 = vld [vmem:[#allocation6 + $0x18] sm:$0xf]
          %v422 = vld [vmem:[#allocation6 + $0x1c] sm:$0xf]
          %v423 = vld [vmem:[#allocation6 + $0x20] sm:$0xf]
          %v424 = vld [vmem:[#allocation6 + $0x24] sm:$0xf]
          %v425 = vld [vmem:[#allocation6 + $0x28] sm:$0xf]
          %v426 = vld [vmem:[#allocation6 + $0x2c] sm:$0xf]
          %v427 = vld [vmem:[#allocation6 + $0x30] sm:$0xf]
          %v428 = vld [vmem:[#allocation6 + $0x34] sm:$0xf]
          %v429 = vld [vmem:[#allocation6 + $0x38] sm:$0xf]
          %v430 = vld [vmem:[#allocation6 + $0x3c] sm:$0xf]
          %v431 = vld [vmem:[%s2] sm:$0x1]
          %v433 = vlaneseq
          %v434 = vshrl.u32 %v433, 7
          %v435 = vsub.s32 0, %v434
          %v436 = vrot.slane %v431, %v435
          %v454 = vunpack.c.l.b16 %v415
          %v455 = vunpack.c.l.b16 %v416
          %v456 = vunpack.c.l.b16 %v417
          %v457 = vunpack.c.l.b16 %v418
          %v458 = vunpack.c.l.b16 %v419
          %v459 = vunpack.c.l.b16 %v420
          %v460 = vunpack.c.l.b16 %v421
          %v461 = vunpack.c.l.b16 %v422
          %v462 = vunpack.c.l.b16 %v423
          %v463 = vunpack.c.l.b16 %v424
          %v464 = vunpack.c.l.b16 %v425
          %v465 = vunpack.c.l.b16 %v426
          %v466 = vunpack.c.l.b16 %v427
          %v467 = vunpack.c.l.b16 %v428
          %v468 = vunpack.c.l.b16 %v429
          %v469 = vunpack.c.l.b16 %v430
          %v470 = vpack.c.b16 %v455, %v454
          %v471 = vpack.c.b16 %v457, %v456
          %v472 = vpack.c.b16 %v459, %v458
          %v473 = vpack.c.b16 %v461, %v460
          %v474 = vpack.c.b16 %v463, %v462
          %v475 = vpack.c.b16 %v465, %v464
          %v476 = vpack.c.b16 %v467, %v466
          %v477 = vpack.c.b16 %v469, %v468
          %486 = vmatprep.subr.bf16.mxu0 0
          %487 = vmatpush1.bf16.msra.mxu0 %v470
          %488 = vmatprep.subr.bf16.mxu0 0
          %489 = vmatpush1.bf16.msra.mxu0 %v471
          %490 = vmatprep.subr.bf16.mxu0 0
          %491 = vmatpush1.bf16.msra.mxu0 %v472
          %492 = vmatprep.subr.bf16.mxu0 0
          %493 = vmatpush1.bf16.msra.mxu0 %v473
          %494 = vmatprep.subr.bf16.mxu0 0
          %495 = vmatpush1.bf16.msra.mxu0 %v474
          %496 = vmatprep.subr.bf16.mxu0 0
          %497 = vmatpush1.bf16.msra.mxu0 %v475
          %498 = vmatprep.subr.bf16.mxu0 0
          %499 = vmatpush1.bf16.msra.mxu0 %v476
          %500 = vmatprep.subr.bf16.mxu0 0
          %501 = vmatpush1.bf16.msra.mxu0 %v477
          %502 = vmatprep.subr.bf16.mxu0 0
          %503 = vmatpush1.bf16.msra.mxu0 0
          %504 = vmatprep.subr.bf16.mxu0 0
          %505 = vmatpush1.bf16.msra.mxu0 0
          %506 = vmatprep.subr.bf16.mxu0 0
          %507 = vmatpush1.bf16.msra.mxu0 0
          %508 = vmatprep.subr.bf16.mxu0 0
          %509 = vmatpush1.bf16.msra.mxu0 0
          %510 = vmatprep.subr.bf16.mxu0 0
          %511 = vmatpush1.bf16.msra.mxu0 0
          %512 = vmatprep.subr.bf16.mxu0 0
          %513 = vmatpush1.bf16.msra.mxu0 0
          %514 = vmatprep.subr.bf16.mxu0 0
          %515 = vmatpush1.bf16.msra.mxu0 0
          %516 = vmatprep.subr.bf16.mxu0 0
          %517 = vmatpush1.bf16.msra.mxu0 0
          %518 = vmatprep.mubr.bf16.mxu0 0
          %519 = vmatmul.mubr.bf16.gmra.mrb[0].mxu0 %v407
          %v520 = vpop.f32.mrb[0].mxu0
          %v521 = vadd.f32 %v436, %v520
          %v522 = vpop.f32.mrb[0].mxu0
          %v523 = vpop.f32.mrb[0].mxu0
          %v524 = vadd.f32 %v436, %v523
          %v525 = vpop.f32.mrb[0].mxu0
          %526 = vmatprep.mubr.bf16.mxu0 0
          %527 = vmatmul.mubr.bf16.gmra.mrb[0].mxu0 %v408
          %v528 = vpop.f32.mrb[0].mxu0
          %v529 = vadd.f32 %v436, %v528
          %v530 = vpop.f32.mrb[0].mxu0
          %v531 = vpop.f32.mrb[0].mxu0
          %v532 = vadd.f32 %v436, %v531
          %v533 = vpop.f32.mrb[0].mxu0
          %534 = vmatprep.mubr.bf16.mxu0 0
          %535 = vmatmul.mubr.bf16.gmra.mrb[0].mxu0 %v409
          %v536 = vpop.f32.mrb[0].mxu0
          %v537 = vadd.f32 %v436, %v536
          %v538 = vpop.f32.mrb[0].mxu0
          %v539 = vpop.f32.mrb[0].mxu0
          %v540 = vadd.f32 %v436, %v539
          %v541 = vpop.f32.mrb[0].mxu0
          %542 = vmatprep.mubr.bf16.mxu0 0
          %543 = vmatmul.mubr.bf16.gmra.mrb[0].mxu0 %v410
          %v544 = vpop.f32.mrb[0].mxu0
          %v545 = vadd.f32 %v436, %v544
          %v546 = vpop.f32.mrb[0].mxu0
          %v547 = vpop.f32.mrb[0].mxu0
          %v548 = vadd.f32 %v436, %v547
          %v549 = vpop.f32.mrb[0].mxu0
          %550 = vmatprep.mubr.bf16.mxu0 0
          %551 = vmatmul.mubr.bf16.gmra.mrb[0].mxu0 %v411
          %v552 = vpop.f32.mrb[0].mxu0
          %v553 = vadd.f32 %v436, %v552
          %v554 = vpop.f32.mrb[0].mxu0
          %v555 = vpop.f32.mrb[0].mxu0
          %v556 = vadd.f32 %v436, %v555
          %v557 = vpop.f32.mrb[0].mxu0
          %558 = vmatprep.mubr.bf16.mxu0 0
          %559 = vmatmul.mubr.bf16.gmra.mrb[0].mxu0 %v412
          %v560 = vpop.f32.mrb[0].mxu0
          %v561 = vadd.f32 %v436, %v560
          %v562 = vpop.f32.mrb[0].mxu0
          %v563 = vpop.f32.mrb[0].mxu0
          %v564 = vadd.f32 %v436, %v563
          %v565 = vpop.f32.mrb[0].mxu0
          %566 = vmatprep.mubr.bf16.mxu0 0
          %567 = vmatmul.mubr.bf16.gmra.mrb[0].mxu0 %v413
          %v568 = vpop.f32.mrb[0].mxu0
          %v569 = vadd.f32 %v436, %v568
          %v570 = vpop.f32.mrb[0].mxu0
          %v571 = vpop.f32.mrb[0].mxu0
          %v572 = vadd.f32 %v436, %v571
          %v573 = vpop.f32.mrb[0].mxu0
          %574 = vmatprep.mubr.bf16.mxu0 0
          %575 = vmatmul.mubr.bf16.gmra.mrb[0].mxu0 %v414
          %v576 = vpop.f32.mrb[0].mxu0
          %v577 = vadd.f32 %v436, %v576
          %v578 = vpop.f32.mrb[0].mxu0
          %v579 = vpop.f32.mrb[0].mxu0
          %v580 = vadd.f32 %v436, %v579
          %v581 = vpop.f32.mrb[0].mxu0
          %582 = vdwg.mxu0
          %v583 = vmul.f32 %v521, 0.5
          %v584 = vmul.f32 %v524, 0.5
          %v585 = vmul.f32 %v529, 0.5
          %v586 = vmul.f32 %v532, 0.5
          %v587 = vmul.f32 %v537, 0.5
          %v588 = vmul.f32 %v540, 0.5
          %v589 = vmul.f32 %v545, 0.5
          %v590 = vmul.f32 %v548, 0.5
          %v591 = vmul.f32 %v553, 0.5
          %v592 = vmul.f32 %v556, 0.5
          %v593 = vmul.f32 %v561, 0.5
          %v594 = vmul.f32 %v564, 0.5
          %v595 = vmul.f32 %v569, 0.5
          %v596 = vmul.f32 %v572, 0.5
          %v597 = vmul.f32 %v577, 0.5
          %v598 = vmul.f32 %v580, 0.5
          %v599 = vmul.f32 %v521, 0.70710677
          %v600 = vmul.f32 %v524, 0.70710677
          %v601 = vmul.f32 %v529, 0.70710677
          %v602 = vmul.f32 %v532, 0.70710677
          %v603 = vmul.f32 %v537, 0.70710677
          %v604 = vmul.f32 %v540, 0.70710677
          %v605 = vmul.f32 %v545, 0.70710677
          %v606 = vmul.f32 %v548, 0.70710677
          %v607 = vmul.f32 %v553, 0.70710677
          %v608 = vmul.f32 %v556, 0.70710677
          %v609 = vmul.f32 %v561, 0.70710677
          %v610 = vmul.f32 %v564, 0.70710677
          %v611 = vmul.f32 %v569, 0.70710677
          %v612 = vmul.f32 %v572, 0.70710677
          %v613 = vmul.f32 %v577, 0.70710677
          %v614 = vmul.f32 %v580, 0.70710677
          %v615 = vand.u32 2147483647, %v599
          %v616 = vand.u32 2147483647, %v600
          %v617 = vand.u32 2147483647, %v601
          %v618 = vand.u32 2147483647, %v602
          %v619 = vand.u32 2147483647, %v603
          %v620 = vand.u32 2147483647, %v604
          %v621 = vand.u32 2147483647, %v605
          %v622 = vand.u32 2147483647, %v606
          %v623 = vand.u32 2147483647, %v607
          %v624 = vand.u32 2147483647, %v608
          %v625 = vand.u32 2147483647, %v609
          %v626 = vand.u32 2147483647, %v610
          %v627 = vand.u32 2147483647, %v611
          %v628 = vand.u32 2147483647, %v612
          %v629 = vand.u32 2147483647, %v613
          %v630 = vand.u32 2147483647, %v614
          %v631 = vmul.f32 %v615, 0.3275911
          %v632 = vmul.f32 %v616, 0.3275911
          %v633 = vmul.f32 %v617, 0.3275911
          %v634 = vmul.f32 %v618, 0.3275911
          %v635 = vmul.f32 %v619, 0.3275911
          %v636 = vmul.f32 %v620, 0.3275911
          %v637 = vmul.f32 %v621, 0.3275911
          %v638 = vmul.f32 %v622, 0.3275911
          %v639 = vmul.f32 %v623, 0.3275911
          %v640 = vmul.f32 %v624, 0.3275911
          %v641 = vmul.f32 %v625, 0.3275911
          %v642 = vmul.f32 %v626, 0.3275911
          %v643 = vmul.f32 %v627, 0.3275911
          %v644 = vmul.f32 %v628, 0.3275911
          %v645 = vmul.f32 %v629, 0.3275911
          %v646 = vmul.f32 %v630, 0.3275911
          %v647 = vadd.f32 %v631, 1.0
          %v648 = vadd.f32 %v632, 1.0
          %v649 = vadd.f32 %v633, 1.0
          %v650 = vadd.f32 %v634, 1.0
          %v651 = vadd.f32 %v635, 1.0
          %v652 = vadd.f32 %v636, 1.0
          %v653 = vadd.f32 %v637, 1.0
          %v654 = vadd.f32 %v638, 1.0
          %v655 = vadd.f32 %v639, 1.0
          %v656 = vadd.f32 %v640, 1.0
          %v657 = vadd.f32 %v641, 1.0
          %v658 = vadd.f32 %v642, 1.0
          %v659 = vadd.f32 %v643, 1.0
          %v660 = vadd.f32 %v644, 1.0
          %v661 = vadd.f32 %v645, 1.0
          %v662 = vadd.f32 %v646, 1.0
          %v663 = vrcp.pop %v647
          %v664 = vmul.f32 1.0, %v663
          %v665 = vrcp.pop %v648
          %v666 = vmul.f32 1.0, %v665
          %v667 = vrcp.pop %v649
          %v668 = vmul.f32 1.0, %v667
          %v669 = vrcp.pop %v650
          %v670 = vmul.f32 1.0, %v669
          %v671 = vrcp.pop %v651
          %v672 = vmul.f32 1.0, %v671
          %v673 = vrcp.pop %v652
          %v674 = vmul.f32 1.0, %v673
          %v675 = vrcp.pop %v653
          %v676 = vmul.f32 1.0, %v675
          %v677 = vrcp.pop %v654
          %v678 = vmul.f32 1.0, %v677
          %v679 = vrcp.pop %v655
          %v680 = vmul.f32 1.0, %v679
          %v681 = vrcp.pop %v656
          %v682 = vmul.f32 1.0, %v681
          %v683 = vrcp.pop %v657
          %v684 = vmul.f32 1.0, %v683
          %v685 = vrcp.pop %v658
          %v686 = vmul.f32 1.0, %v685
          %v687 = vrcp.pop %v659
          %v688 = vmul.f32 1.0, %v687
          %v689 = vrcp.pop %v660
          %v690 = vmul.f32 1.0, %v689
          %v691 = vrcp.pop %v661
          %v692 = vmul.f32 1.0, %v691
          %v693 = vrcp.pop %v662
          %v694 = vmul.f32 1.0, %v693
          %v695 = vmul.f32 %v664, 1.0614054
          %v696 = vmul.f32 %v666, 1.0614054
          %v697 = vmul.f32 %v668, 1.0614054
          %v698 = vmul.f32 %v670, 1.0614054
          %v699 = vmul.f32 %v672, 1.0614054
          %v700 = vmul.f32 %v674, 1.0614054
          %v701 = vmul.f32 %v676, 1.0614054
          %v702 = vmul.f32 %v678, 1.0614054
          %v703 = vmul.f32 %v680, 1.0614054
          %v704 = vmul.f32 %v682, 1.0614054
          %v705 = vmul.f32 %v684, 1.0614054
          %v706 = vmul.f32 %v686, 1.0614054
          %v707 = vmul.f32 %v688, 1.0614054
          %v708 = vmul.f32 %v690, 1.0614054
          %v709 = vmul.f32 %v692, 1.0614054
          %v710 = vmul.f32 %v694, 1.0614054
          %v711 = vsub.f32 %v695, 1.4531521
          %v712 = vsub.f32 %v696, 1.4531521
          %v713 = vsub.f32 %v697, 1.4531521
          %v714 = vsub.f32 %v698, 1.4531521
          %v715 = vsub.f32 %v699, 1.4531521
          %v716 = vsub.f32 %v700, 1.4531521
          %v717 = vsub.f32 %v701, 1.4531521
          %v718 = vsub.f32 %v702, 1.4531521
          %v719 = vsub.f32 %v703, 1.4531521
          %v720 = vsub.f32 %v704, 1.4531521
          %v721 = vsub.f32 %v705, 1.4531521
          %v722 = vsub.f32 %v706, 1.4531521
          %v723 = vsub.f32 %v707, 1.4531521
          %v724 = vsub.f32 %v708, 1.4531521
          %v725 = vsub.f32 %v709, 1.4531521
          %v726 = vsub.f32 %v710, 1.4531521
          %v727 = vmul.f32 %v711, %v664
          %v728 = vmul.f32 %v712, %v666
          %v729 = vmul.f32 %v713, %v668
          %v730 = vmul.f32 %v714, %v670
          %v731 = vmul.f32 %v715, %v672
          %v732 = vmul.f32 %v716, %v674
          %v733 = vmul.f32 %v717, %v676
          %v734 = vmul.f32 %v718, %v678
          %v735 = vmul.f32 %v719, %v680
          %v736 = vmul.f32 %v720, %v682
          %v737 = vmul.f32 %v721, %v684
          %v738 = vmul.f32 %v722, %v686
          %v739 = vmul.f32 %v723, %v688
          %v740 = vmul.f32 %v724, %v690
          %v741 = vmul.f32 %v725, %v692
          %v742 = vmul.f32 %v726, %v694
          %v743 = vadd.f32 %v727, 1.4214138
          %v744 = vadd.f32 %v728, 1.4214138
          %v745 = vadd.f32 %v729, 1.4214138
          %v746 = vadd.f32 %v730, 1.4214138
          %v747 = vadd.f32 %v731, 1.4214138
          %v748 = vadd.f32 %v732, 1.4214138
          %v749 = vadd.f32 %v733, 1.4214138
          %v750 = vadd.f32 %v734, 1.4214138
          %v751 = vadd.f32 %v735, 1.4214138
          %v752 = vadd.f32 %v736, 1.4214138
          %v753 = vadd.f32 %v737, 1.4214138
          %v754 = vadd.f32 %v738, 1.4214138
          %v755 = vadd.f32 %v739, 1.4214138
          %v756 = vadd.f32 %v740, 1.4214138
          %v757 = vadd.f32 %v741, 1.4214138
          %v758 = vadd.f32 %v742, 1.4214138
          %v759 = vmul.f32 %v743, %v664
          %v760 = vmul.f32 %v744, %v666
          %v761 = vmul.f32 %v745, %v668
          %v762 = vmul.f32 %v746, %v670
          %v763 = vmul.f32 %v747, %v672
          %v764 = vmul.f32 %v748, %v674
          %v765 = vmul.f32 %v749, %v676
          %v766 = vmul.f32 %v750, %v678
          %v767 = vmul.f32 %v751, %v680
          %v768 = vmul.f32 %v752, %v682
          %v769 = vmul.f32 %v753, %v684
          %v770 = vmul.f32 %v754, %v686
          %v771 = vmul.f32 %v755, %v688
          %v772 = vmul.f32 %v756, %v690
          %v773 = vmul.f32 %v757, %v692
          %v774 = vmul.f32 %v758, %v694
          %v775 = vsub.f32 %v759, 0.28449672
          %v776 = vsub.f32 %v760, 0.28449672
          %v777 = vsub.f32 %v761, 0.28449672
          %v778 = vsub.f32 %v762, 0.28449672
          %v779 = vsub.f32 %v763, 0.28449672
          %v780 = vsub.f32 %v764, 0.28449672
          %v781 = vsub.f32 %v765, 0.28449672
          %v782 = vsub.f32 %v766, 0.28449672
          %v783 = vsub.f32 %v767, 0.28449672
          %v784 = vsub.f32 %v768, 0.28449672
          %v785 = vsub.f32 %v769, 0.28449672
          %v786 = vsub.f32 %v770, 0.28449672
          %v787 = vsub.f32 %v771, 0.28449672
          %v788 = vsub.f32 %v772, 0.28449672
          %v789 = vsub.f32 %v773, 0.28449672
          %v790 = vsub.f32 %v774, 0.28449672
          %v791 = vmul.f32 %v775, %v664
          %v792 = vmul.f32 %v776, %v666
          %v793 = vmul.f32 %v777, %v668
          %v794 = vmul.f32 %v778, %v670
          %v795 = vmul.f32 %v779, %v672
          %v796 = vmul.f32 %v780, %v674
          %v797 = vmul.f32 %v781, %v676
          %v798 = vmul.f32 %v782, %v678
          %v799 = vmul.f32 %v783, %v680
          %v800 = vmul.f32 %v784, %v682
          %v801 = vmul.f32 %v785, %v684
          %v802 = vmul.f32 %v786, %v686
          %v803 = vmul.f32 %v787, %v688
          %v804 = vmul.f32 %v788, %v690
          %v805 = vmul.f32 %v789, %v692
          %v806 = vmul.f32 %v790, %v694
          %v807 = vadd.f32 %v791, 0.2548296
          %v808 = vadd.f32 %v792, 0.2548296
          %v809 = vadd.f32 %v793, 0.2548296
          %v810 = vadd.f32 %v794, 0.2548296
          %v811 = vadd.f32 %v795, 0.2548296
          %v812 = vadd.f32 %v796, 0.2548296
          %v813 = vadd.f32 %v797, 0.2548296
          %v814 = vadd.f32 %v798, 0.2548296
          %v815 = vadd.f32 %v799, 0.2548296
          %v816 = vadd.f32 %v800, 0.2548296
          %v817 = vadd.f32 %v801, 0.2548296
          %v818 = vadd.f32 %v802, 0.2548296
          %v819 = vadd.f32 %v803, 0.2548296
          %v820 = vadd.f32 %v804, 0.2548296
          %v821 = vadd.f32 %v805, 0.2548296
          %v822 = vadd.f32 %v806, 0.2548296
          %v823 = vmul.f32 %v807, %v664
          %v824 = vmul.f32 %v808, %v666
          %v825 = vmul.f32 %v809, %v668
          %v826 = vmul.f32 %v810, %v670
          %v827 = vmul.f32 %v811, %v672
          %v828 = vmul.f32 %v812, %v674
          %v829 = vmul.f32 %v813, %v676
          %v830 = vmul.f32 %v814, %v678
          %v831 = vmul.f32 %v815, %v680
          %v832 = vmul.f32 %v816, %v682
          %v833 = vmul.f32 %v817, %v684
          %v834 = vmul.f32 %v818, %v686
          %v835 = vmul.f32 %v819, %v688
          %v836 = vmul.f32 %v820, %v690
          %v837 = vmul.f32 %v821, %v692
          %v838 = vmul.f32 %v822, %v694
          %v839 = vsub.f32 0.0, %v615
          %v840 = vsub.f32 0.0, %v616
          %v841 = vsub.f32 0.0, %v617
          %v842 = vsub.f32 0.0, %v618
          %v843 = vsub.f32 0.0, %v619
          %v844 = vsub.f32 0.0, %v620
          %v845 = vsub.f32 0.0, %v621
          %v846 = vsub.f32 0.0, %v622
          %v847 = vsub.f32 0.0, %v623
          %v848 = vsub.f32 0.0, %v624
          %v849 = vsub.f32 0.0, %v625
          %v850 = vsub.f32 0.0, %v626
          %v851 = vsub.f32 0.0, %v627
          %v852 = vsub.f32 0.0, %v628
          %v853 = vsub.f32 0.0, %v629
          %v854 = vsub.f32 0.0, %v630
          %v855 = vmul.f32 %v839, %v615
          %v856 = vmul.f32 %v840, %v616
          %v857 = vmul.f32 %v841, %v617
          %v858 = vmul.f32 %v842, %v618
          %v859 = vmul.f32 %v843, %v619
          %v860 = vmul.f32 %v844, %v620
          %v861 = vmul.f32 %v845, %v621
          %v862 = vmul.f32 %v846, %v622
          %v863 = vmul.f32 %v847, %v623
          %v864 = vmul.f32 %v848, %v624
          %v865 = vmul.f32 %v849, %v625
          %v866 = vmul.f32 %v850, %v626
          %v867 = vmul.f32 %v851, %v627
          %v868 = vmul.f32 %v852, %v628
          %v869 = vmul.f32 %v853, %v629
          %v870 = vmul.f32 %v854, %v630
          %v871 = vmul.f32 %v855, 1.442695
          %v872 = vpow.pop %v871
          %v873 = vmul.f32 %v856, 1.442695
          %v874 = vpow.pop %v873
          %v875 = vmul.f32 %v857, 1.442695
          %v876 = vpow.pop %v875
          %v877 = vmul.f32 %v858, 1.442695
          %v878 = vpow.pop %v877
          %v879 = vmul.f32 %v859, 1.442695
          %v880 = vpow.pop %v879
          %v881 = vmul.f32 %v860, 1.442695
          %v882 = vpow.pop %v881
          %v883 = vmul.f32 %v861, 1.442695
          %v884 = vpow.pop %v883
          %v885 = vmul.f32 %v862, 1.442695
          %v886 = vpow.pop %v885
          %v887 = vmul.f32 %v863, 1.442695
          %v888 = vpow.pop %v887
          %v889 = vmul.f32 %v864, 1.442695
          %v890 = vpow.pop %v889
          %v891 = vmul.f32 %v865, 1.442695
          %v892 = vpow.pop %v891
          %v893 = vmul.f32 %v866, 1.442695
          %v894 = vpow.pop %v893
          %v895 = vmul.f32 %v867, 1.442695
          %v896 = vpow.pop %v895
          %v897 = vmul.f32 %v868, 1.442695
          %v898 = vpow.pop %v897
          %v899 = vmul.f32 %v869, 1.442695
          %v900 = vpow.pop %v899
          %v901 = vmul.f32 %v870, 1.442695
          %v902 = vpow.pop %v901
          %v903 = vmul.f32 %v823, %v872
          %v904 = vmul.f32 %v824, %v874
          %v905 = vmul.f32 %v825, %v876
          %v906 = vmul.f32 %v826, %v878
          %v907 = vmul.f32 %v827, %v880
          %v908 = vmul.f32 %v828, %v882
          %v909 = vmul.f32 %v829, %v884
          %v910 = vmul.f32 %v830, %v886
          %v911 = vmul.f32 %v831, %v888
          %v912 = vmul.f32 %v832, %v890
          %v913 = vmul.f32 %v833, %v892
          %v914 = vmul.f32 %v834, %v894
          %v915 = vmul.f32 %v835, %v896
          %v916 = vmul.f32 %v836, %v898
          %v917 = vmul.f32 %v837, %v900
          %v918 = vmul.f32 %v838, %v902
          %v919 = vsub.f32 1.0, %v903
          %v920 = vsub.f32 1.0, %v904
          %v921 = vsub.f32 1.0, %v905
          %v922 = vsub.f32 1.0, %v906
          %v923 = vsub.f32 1.0, %v907
          %v924 = vsub.f32 1.0, %v908
          %v925 = vsub.f32 1.0, %v909
          %v926 = vsub.f32 1.0, %v910
          %v927 = vsub.f32 1.0, %v911
          %v928 = vsub.f32 1.0, %v912
          %v929 = vsub.f32 1.0, %v913
          %v930 = vsub.f32 1.0, %v914
          %v931 = vsub.f32 1.0, %v915
          %v932 = vsub.f32 1.0, %v916
          %v933 = vsub.f32 1.0, %v917
          %v934 = vsub.f32 1.0, %v918
          %vm935 = vcmp.ge.f32.partialorder %v599, 0.0
          %vm936 = vcmp.ge.f32.partialorder %v600, 0.0
          %vm937 = vcmp.ge.f32.partialorder %v601, 0.0
          %vm938 = vcmp.ge.f32.partialorder %v602, 0.0
          %vm939 = vcmp.ge.f32.partialorder %v603, 0.0
          %vm940 = vcmp.ge.f32.partialorder %v604, 0.0
          %vm941 = vcmp.ge.f32.partialorder %v605, 0.0
          %vm942 = vcmp.ge.f32.partialorder %v606, 0.0
          %vm943 = vcmp.ge.f32.partialorder %v607, 0.0
          %vm944 = vcmp.ge.f32.partialorder %v608, 0.0
          %vm945 = vcmp.ge.f32.partialorder %v609, 0.0
          %vm946 = vcmp.ge.f32.partialorder %v610, 0.0
          %vm947 = vcmp.ge.f32.partialorder %v611, 0.0
          %vm948 = vcmp.ge.f32.partialorder %v612, 0.0
          %vm949 = vcmp.ge.f32.partialorder %v613, 0.0
          %vm950 = vcmp.ge.f32.partialorder %v614, 0.0
          %v951 = vsub.f32 0.0, %v919
          %v952 = vsub.f32 0.0, %v920
          %v953 = vsub.f32 0.0, %v921
          %v954 = vsub.f32 0.0, %v922
          %v955 = vsub.f32 0.0, %v923
          %v956 = vsub.f32 0.0, %v924
          %v957 = vsub.f32 0.0, %v925
          %v958 = vsub.f32 0.0, %v926
          %v959 = vsub.f32 0.0, %v927
          %v960 = vsub.f32 0.0, %v928
          %v961 = vsub.f32 0.0, %v929
          %v962 = vsub.f32 0.0, %v930
          %v963 = vsub.f32 0.0, %v931
          %v964 = vsub.f32 0.0, %v932
          %v965 = vsub.f32 0.0, %v933
          %v966 = vsub.f32 0.0, %v934
          %v967 = vsel %vm935, %v919, %v951
          %v968 = vsel %vm936, %v920, %v952
          %v969 = vsel %vm937, %v921, %v953
          %v970 = vsel %vm938, %v922, %v954
          %v971 = vsel %vm939, %v923, %v955
          %v972 = vsel %vm940, %v924, %v956
          %v973 = vsel %vm941, %v925, %v957
          %v974 = vsel %vm942, %v926, %v958
          %v975 = vsel %vm943, %v927, %v959
          %v976 = vsel %vm944, %v928, %v960
          %v977 = vsel %vm945, %v929, %v961
          %v978 = vsel %vm946, %v930, %v962
          %v979 = vsel %vm947, %v931, %v963
          %v980 = vsel %vm948, %v932, %v964
          %v981 = vsel %vm949, %v933, %v965
          %v982 = vsel %vm950, %v934, %v966
          %v983 = vadd.f32 %v967, 1.0
          %v984 = vadd.f32 %v968, 1.0
          %v985 = vadd.f32 %v969, 1.0
          %v986 = vadd.f32 %v970, 1.0
          %v987 = vadd.f32 %v971, 1.0
          %v988 = vadd.f32 %v972, 1.0
          %v989 = vadd.f32 %v973, 1.0
          %v990 = vadd.f32 %v974, 1.0
          %v991 = vadd.f32 %v975, 1.0
          %v992 = vadd.f32 %v976, 1.0
          %v993 = vadd.f32 %v977, 1.0
          %v994 = vadd.f32 %v978, 1.0
          %v995 = vadd.f32 %v979, 1.0
          %v996 = vadd.f32 %v980, 1.0
          %v997 = vadd.f32 %v981, 1.0
          %v998 = vadd.f32 %v982, 1.0
          %v999 = vmul.f32 %v583, %v983
          %v1000 = vmul.f32 %v584, %v984
          %v1001 = vmul.f32 %v585, %v985
          %v1002 = vmul.f32 %v586, %v986
          %v1003 = vmul.f32 %v587, %v987
          %v1004 = vmul.f32 %v588, %v988
          %v1005 = vmul.f32 %v589, %v989
          %v1006 = vmul.f32 %v590, %v990
          %v1007 = vmul.f32 %v591, %v991
          %v1008 = vmul.f32 %v592, %v992
          %v1009 = vmul.f32 %v593, %v993
          %v1010 = vmul.f32 %v594, %v994
          %v1011 = vmul.f32 %v595, %v995
          %v1012 = vmul.f32 %v596, %v996
          %v1013 = vmul.f32 %v597, %v997
          %v1014 = vmul.f32 %v598, %v998
          %v1015 = vld [vmem:[%s3] sm:$0x1]
          %v1016 = vld [vmem:[%s4] sm:$0x1]
          %1017 = vadd.xlane.f32.xlu0 %v999
          %v1018 = vpop.xlane.xlu0 %1017
          %1019 = vadd.xlane.f32.xlu0 %v1000
          %v1020 = vpop.xlane.xlu0 %1019
          %1021 = vadd.xlane.f32.xlu0 %v1001
          %v1022 = vpop.xlane.xlu0 %1021
          %1023 = vadd.xlane.f32.xlu0 %v1002
          %v1024 = vpop.xlane.xlu0 %1023
          %1025 = vadd.xlane.f32.xlu0 %v1003
          %v1026 = vpop.xlane.xlu0 %1025
          %1027 = vadd.xlane.f32.xlu0 %v1004
          %v1028 = vpop.xlane.xlu0 %1027
          %1029 = vadd.xlane.f32.xlu0 %v1005
          %v1030 = vpop.xlane.xlu0 %1029
          %1031 = vadd.xlane.f32.xlu0 %v1006
          %v1032 = vpop.xlane.xlu0 %1031
          %1033 = vadd.xlane.f32.xlu0 %v1007
          %v1034 = vpop.xlane.xlu0 %1033
          %1035 = vadd.xlane.f32.xlu0 %v1008
          %v1036 = vpop.xlane.xlu0 %1035
          %1037 = vadd.xlane.f32.xlu0 %v1009
          %v1038 = vpop.xlane.xlu0 %1037
          %1039 = vadd.xlane.f32.xlu0 %v1010
          %v1040 = vpop.xlane.xlu0 %1039
          %1041 = vadd.xlane.f32.xlu0 %v1011
          %v1042 = vpop.xlane.xlu0 %1041
          %1043 = vadd.xlane.f32.xlu0 %v1012
          %v1044 = vpop.xlane.xlu0 %1043
          %1045 = vadd.xlane.f32.xlu0 %v1013
          %v1046 = vpop.xlane.xlu0 %1045
          %1047 = vadd.xlane.f32.xlu0 %v1014
          %v1048 = vpop.xlane.xlu0 %1047
          %v1049 = vrcp.pop 128.0
          %v1050 = vmul.f32 %v1018, %v1049
          %v1051 = vmul.f32 %v1020, %v1049
          %v1052 = vmul.f32 %v1022, %v1049
          %v1053 = vmul.f32 %v1024, %v1049
          %v1054 = vmul.f32 %v1026, %v1049
          %v1055 = vmul.f32 %v1028, %v1049
          %v1056 = vmul.f32 %v1030, %v1049
          %v1057 = vmul.f32 %v1032, %v1049
          %v1058 = vmul.f32 %v1034, %v1049
          %v1059 = vmul.f32 %v1036, %v1049
          %v1060 = vmul.f32 %v1038, %v1049
          %v1061 = vmul.f32 %v1040, %v1049
          %v1062 = vmul.f32 %v1042, %v1049
          %v1063 = vmul.f32 %v1044, %v1049
          %v1064 = vmul.f32 %v1046, %v1049
          %v1065 = vmul.f32 %v1048, %v1049
          %v1066 = vsub.f32 %v999, %v1050
          %v1067 = vsub.f32 %v1000, %v1051
          %v1068 = vsub.f32 %v1001, %v1052
          %v1069 = vsub.f32 %v1002, %v1053
          %v1070 = vsub.f32 %v1003, %v1054
          %v1071 = vsub.f32 %v1004, %v1055
          %v1072 = vsub.f32 %v1005, %v1056
          %v1073 = vsub.f32 %v1006, %v1057
          %v1074 = vsub.f32 %v1007, %v1058
          %v1075 = vsub.f32 %v1008, %v1059
          %v1076 = vsub.f32 %v1009, %v1060
          %v1077 = vsub.f32 %v1010, %v1061
          %v1078 = vsub.f32 %v1011, %v1062
          %v1079 = vsub.f32 %v1012, %v1063
          %v1080 = vsub.f32 %v1013, %v1064
          %v1081 = vsub.f32 %v1014, %v1065
          %v1082 = vmul.f32 %v1066, %v1066
          %v1083 = vmul.f32 %v1067, %v1067
          %v1084 = vmul.f32 %v1068, %v1068
          %v1085 = vmul.f32 %v1069, %v1069
          %v1086 = vmul.f32 %v1070, %v1070
          %v1087 = vmul.f32 %v1071, %v1071
          %v1088 = vmul.f32 %v1072, %v1072
          %v1089 = vmul.f32 %v1073, %v1073
          %v1090 = vmul.f32 %v1074, %v1074
          %v1091 = vmul.f32 %v1075, %v1075
          %v1092 = vmul.f32 %v1076, %v1076
          %v1093 = vmul.f32 %v1077, %v1077
          %v1094 = vmul.f32 %v1078, %v1078
          %v1095 = vmul.f32 %v1079, %v1079
          %v1096 = vmul.f32 %v1080, %v1080
          %v1097 = vmul.f32 %v1081, %v1081
          %1098 = vadd.xlane.f32.xlu0 %v1082
          %v1099 = vpop.xlane.xlu0 %1098
          %1100 = vadd.xlane.f32.xlu0 %v1083
          %v1101 = vpop.xlane.xlu0 %1100
          %1102 = vadd.xlane.f32.xlu0 %v1084
          %v1103 = vpop.xlane.xlu0 %1102
          %1104 = vadd.xlane.f32.xlu0 %v1085
          %v1105 = vpop.xlane.xlu0 %1104
          %1106 = vadd.xlane.f32.xlu0 %v1086
          %v1107 = vpop.xlane.xlu0 %1106
          %1108 = vadd.xlane.f32.xlu0 %v1087
          %v1109 = vpop.xlane.xlu0 %1108
          %1110 = vadd.xlane.f32.xlu0 %v1088
          %v1111 = vpop.xlane.xlu0 %1110
          %1112 = vadd.xlane.f32.xlu0 %v1089
          %v1113 = vpop.xlane.xlu0 %1112
          %1114 = vadd.xlane.f32.xlu0 %v1090
          %v1115 = vpop.xlane.xlu0 %1114
          %1116 = vadd.xlane.f32.xlu0 %v1091
          %v1117 = vpop.xlane.xlu0 %1116
          %1118 = vadd.xlane.f32.xlu0 %v1092
          %v1119 = vpop.xlane.xlu0 %1118
          %1120 = vadd.xlane.f32.xlu0 %v1093
          %v1121 = vpop.xlane.xlu0 %1120
          %1122 = vadd.xlane.f32.xlu0 %v1094
          %v1123 = vpop.xlane.xlu0 %1122
          %1124 = vadd.xlane.f32.xlu0 %v1095
          %v1125 = vpop.xlane.xlu0 %1124
          %1126 = vadd.xlane.f32.xlu0 %v1096
          %v1127 = vpop.xlane.xlu0 %1126
          %1128 = vadd.xlane.f32.xlu0 %v1097
          %v1129 = vpop.xlane.xlu0 %1128
          %v1130 = vmul.f32 %v1099, %v1049
          %v1131 = vmul.f32 %v1101, %v1049
          %v1132 = vmul.f32 %v1103, %v1049
          %v1133 = vmul.f32 %v1105, %v1049
          %v1134 = vmul.f32 %v1107, %v1049
          %v1135 = vmul.f32 %v1109, %v1049
          %v1136 = vmul.f32 %v1111, %v1049
          %v1137 = vmul.f32 %v1113, %v1049
          %v1138 = vmul.f32 %v1115, %v1049
          %v1139 = vmul.f32 %v1117, %v1049
          %v1140 = vmul.f32 %v1119, %v1049
          %v1141 = vmul.f32 %v1121, %v1049
          %v1142 = vmul.f32 %v1123, %v1049
          %v1143 = vmul.f32 %v1125, %v1049
          %v1144 = vmul.f32 %v1127, %v1049
          %v1145 = vmul.f32 %v1129, %v1049
          %v1146 = vadd.f32 %v1130, 1e-12
          %v1147 = vadd.f32 %v1131, 1e-12
          %v1148 = vadd.f32 %v1132, 1e-12
          %v1149 = vadd.f32 %v1133, 1e-12
          %v1150 = vadd.f32 %v1134, 1e-12
          %v1151 = vadd.f32 %v1135, 1e-12
          %v1152 = vadd.f32 %v1136, 1e-12
          %v1153 = vadd.f32 %v1137, 1e-12
          %v1154 = vadd.f32 %v1138, 1e-12
          %v1155 = vadd.f32 %v1139, 1e-12
          %v1156 = vadd.f32 %v1140, 1e-12
          %v1157 = vadd.f32 %v1141, 1e-12
          %v1158 = vadd.f32 %v1142, 1e-12
          %v1159 = vadd.f32 %v1143, 1e-12
          %v1160 = vadd.f32 %v1144, 1e-12
          %v1161 = vadd.f32 %v1145, 1e-12
          %v1162 = vrsqrt.pop %v1146
          %v1163 = vrsqrt.pop %v1147
          %v1164 = vrsqrt.pop %v1148
          %v1165 = vrsqrt.pop %v1149
          %v1166 = vrsqrt.pop %v1150
          %v1167 = vrsqrt.pop %v1151
          %v1168 = vrsqrt.pop %v1152
          %v1169 = vrsqrt.pop %v1153
          %v1170 = vrsqrt.pop %v1154
          %v1171 = vrsqrt.pop %v1155
          %v1172 = vrsqrt.pop %v1156
          %v1173 = vrsqrt.pop %v1157
          %v1174 = vrsqrt.pop %v1158
          %v1175 = vrsqrt.pop %v1159
          %v1176 = vrsqrt.pop %v1160
          %v1177 = vrsqrt.pop %v1161
          %v1178 = vmul.f32 %v1066, %v1162
          %v1179 = vmul.f32 %v1067, %v1163
          %v1180 = vmul.f32 %v1068, %v1164
          %v1181 = vmul.f32 %v1069, %v1165
          %v1182 = vmul.f32 %v1070, %v1166
          %v1183 = vmul.f32 %v1071, %v1167
          %v1184 = vmul.f32 %v1072, %v1168
          %v1185 = vmul.f32 %v1073, %v1169
          %v1186 = vmul.f32 %v1074, %v1170
          %v1187 = vmul.f32 %v1075, %v1171
          %v1188 = vmul.f32 %v1076, %v1172
          %v1189 = vmul.f32 %v1077, %v1173
          %v1190 = vmul.f32 %v1078, %v1174
          %v1191 = vmul.f32 %v1079, %v1175
          %v1192 = vmul.f32 %v1080, %v1176
          %v1193 = vmul.f32 %v1081, %v1177
          %v1195 = vlaneseq
          %v1196 = vshrl.u32 %v1195, 7
          %v1197 = vsub.s32 0, %v1196
          %v1198 = vrot.slane %v1015, %v1197
          %v1200 = vmul.f32 %v1178, %v1198
          %v1201 = vmul.f32 %v1179, %v1198
          %v1202 = vmul.f32 %v1180, %v1198
          %v1203 = vmul.f32 %v1181, %v1198
          %v1204 = vmul.f32 %v1182, %v1198
          %v1205 = vmul.f32 %v1183, %v1198
          %v1206 = vmul.f32 %v1184, %v1198
          %v1207 = vmul.f32 %v1185, %v1198
          %v1208 = vmul.f32 %v1186, %v1198
          %v1209 = vmul.f32 %v1187, %v1198
          %v1210 = vmul.f32 %v1188, %v1198
          %v1211 = vmul.f32 %v1189, %v1198
          %v1212 = vmul.f32 %v1190, %v1198
          %v1213 = vmul.f32 %v1191, %v1198
          %v1214 = vmul.f32 %v1192, %v1198
          %v1215 = vmul.f32 %v1193, %v1198
          %v1217 = vlaneseq
          %v1218 = vshrl.u32 %v1217, 7
          %v1219 = vsub.s32 0, %v1218
          %v1220 = vrot.slane %v1016, %v1219
          %v1222 = vadd.f32 %v1200, %v1220
          %v1223 = vadd.f32 %v1201, %v1220
          %v1224 = vadd.f32 %v1202, %v1220
          %v1225 = vadd.f32 %v1203, %v1220
          %v1226 = vadd.f32 %v1204, %v1220
          %v1227 = vadd.f32 %v1205, %v1220
          %v1228 = vadd.f32 %v1206, %v1220
          %v1229 = vadd.f32 %v1207, %v1220
          %v1230 = vadd.f32 %v1208, %v1220
          %v1231 = vadd.f32 %v1209, %v1220
          %v1232 = vadd.f32 %v1210, %v1220
          %v1233 = vadd.f32 %v1211, %v1220
          %v1234 = vadd.f32 %v1212, %v1220
          %v1235 = vadd.f32 %v1213, %v1220
          %v1236 = vadd.f32 %v1214, %v1220
          %v1237 = vadd.f32 %v1215, %v1220
          %1238 = vst [vmem:[#allocation2] sm:$0xff] %v1222
          %1239 = vst [vmem:[#allocation2 + $0x8] sm:$0xff] %v1223
          %1240 = vst [vmem:[#allocation2 + $0x10] sm:$0xff] %v1224
          %1241 = vst [vmem:[#allocation2 + $0x18] sm:$0xff] %v1225
          %1242 = vst [vmem:[#allocation2 + $0x20] sm:$0xff] %v1226
          %1243 = vst [vmem:[#allocation2 + $0x28] sm:$0xff] %v1227
          %1244 = vst [vmem:[#allocation2 + $0x30] sm:$0xff] %v1228
          %1245 = vst [vmem:[#allocation2 + $0x38] sm:$0xff] %v1229
          %1246 = vst [vmem:[#allocation2 + $0x40] sm:$0xff] %v1230
          %1247 = vst [vmem:[#allocation2 + $0x48] sm:$0xff] %v1231
          %1248 = vst [vmem:[#allocation2 + $0x50] sm:$0xff] %v1232
          %1249 = vst [vmem:[#allocation2 + $0x58] sm:$0xff] %v1233
          %1250 = vst [vmem:[#allocation2 + $0x60] sm:$0xff] %v1234
          %1251 = vst [vmem:[#allocation2 + $0x68] sm:$0xff] %v1235
          %1252 = vst [vmem:[#allocation2 + $0x70] sm:$0xff] %v1236
          %1253 = vst [vmem:[#allocation2 + $0x78] sm:$0xff] %v1237
        $region64: #{tpu_custom_call.1} parent=47 // pred_fallthru
          _
        %v1254 = vld [vmem:[#allocation2] sm:$0xff]
        %v1255 = vld [vmem:[#allocation2 + $0x8] sm:$0xff]
        %v1256 = vld [vmem:[#allocation2 + $0x10] sm:$0xff]
        %v1257 = vld [vmem:[#allocation2 + $0x18] sm:$0xff]
        %v1258 = vld [vmem:[#allocation2 + $0x20] sm:$0xff]
        %v1259 = vld [vmem:[#allocation2 + $0x28] sm:$0xff]
        %v1260 = vld [vmem:[#allocation2 + $0x30] sm:$0xff]
        %v1261 = vld [vmem:[#allocation2 + $0x38] sm:$0xff]
        %v1262 = vld [vmem:[#allocation2 + $0x40] sm:$0xff]
        %v1263 = vld [vmem:[#allocation2 + $0x48] sm:$0xff]
        %v1264 = vld [vmem:[#allocation2 + $0x50] sm:$0xff]
        %v1265 = vld [vmem:[#allocation2 + $0x58] sm:$0xff]
        %v1266 = vld [vmem:[#allocation2 + $0x60] sm:$0xff]
        %v1267 = vld [vmem:[#allocation2 + $0x68] sm:$0xff]
        %v1268 = vld [vmem:[#allocation2 + $0x70] sm:$0xff]
        %v1269 = vld [vmem:[#allocation2 + $0x78] sm:$0xff]
        %v1270 = vpack.c.bf16 %v1255, %v1254
        %v1271 = vpack.c.bf16 %v1257, %v1256
        %v1272 = vpack.c.bf16 %v1259, %v1258
        %v1273 = vpack.c.bf16 %v1261, %v1260
        %v1274 = vpack.c.bf16 %v1263, %v1262
        %v1275 = vpack.c.bf16 %v1265, %v1264
        %v1276 = vpack.c.bf16 %v1267, %v1266
        %v1277 = vpack.c.bf16 %v1269, %v1268
        %v1278 = vld [vmem:[%s337] sm:$0xff]
        %v1279 = vld [vmem:[%s337 + $0x8] sm:$0xff]
        %v1280 = vld [vmem:[%s337 + $0x10] sm:$0xff]
        %v1281 = vld [vmem:[%s337 + $0x18] sm:$0xff]
        %v1282 = vld [vmem:[%s337 + $0x20] sm:$0xff]
        %v1283 = vld [vmem:[%s337 + $0x28] sm:$0xff]
        %v1284 = vld [vmem:[%s337 + $0x30] sm:$0xff]
        %v1285 = vld [vmem:[%s337 + $0x38] sm:$0xff]
        %v1286 = vld [vmem:[%s337 + $0x40] sm:$0xff]
        %v1287 = vld [vmem:[%s337 + $0x48] sm:$0xff]
        %v1288 = vld [vmem:[%s337 + $0x50] sm:$0xff]
        %v1289 = vld [vmem:[%s337 + $0x58] sm:$0xff]
        %v1290 = vld [vmem:[%s337 + $0x60] sm:$0xff]
        %v1291 = vld [vmem:[%s337 + $0x68] sm:$0xff]
        %v1292 = vld [vmem:[%s337 + $0x70] sm:$0xff]
        %v1293 = vld [vmem:[%s337 + $0x78] sm:$0xff]
        %v1294 = vld [vmem:[%s337 + $0x80] sm:$0xff]
        %v1295 = vld [vmem:[%s337 + $0x88] sm:$0xff]
        %v1296 = vld [vmem:[%s337 + $0x90] sm:$0xff]
        %v1297 = vld [vmem:[%s337 + $0x98] sm:$0xff]
        %v1298 = vld [vmem:[%s337 + $0xa0] sm:$0xff]
        %v1299 = vld [vmem:[%s337 + $0xa8] sm:$0xff]
        %v1300 = vld [vmem:[%s337 + $0xb0] sm:$0xff]
        %v1301 = vld [vmem:[%s337 + $0xb8] sm:$0xff]
        %v1302 = vld [vmem:[%s337 + $0xc0] sm:$0xff]
        %v1303 = vld [vmem:[%s337 + $0xc8] sm:$0xff]
        %v1304 = vld [vmem:[%s337 + $0xd0] sm:$0xff]
        %v1305 = vld [vmem:[%s337 + $0xd8] sm:$0xff]
        %v1306 = vld [vmem:[%s337 + $0xe0] sm:$0xff]
        %v1307 = vld [vmem:[%s337 + $0xe8] sm:$0xff]
        %v1308 = vld [vmem:[%s337 + $0xf0] sm:$0xff]
        %v1309 = vld [vmem:[%s337 + $0xf8] sm:$0xff]
        %v1310 = vld [vmem:[%s382] sm:$0xf]
        %v1312 = vlaneseq
        %v1313 = vshrl.u32 %v1312, 7
        %v1314 = vsub.s32 0, %v1313
        %v1315 = vrot.slane %v1310, %v1314
        %v1316 = vlaneseq
        %v1317 = vshrl.u32 %v1316, 7
        %v1318 = vsub.s32 1, %v1317
        %v1319 = vrot.slane %v1310, %v1318
        %v1320 = vlaneseq
        %v1321 = vshrl.u32 %v1320, 7
        %v1322 = vsub.s32 2, %v1321
        %v1323 = vrot.slane %v1310, %v1322
        %v1324 = vlaneseq
        %v1325 = vshrl.u32 %v1324, 7
        %v1326 = vsub.s32 3, %v1325
        %v1327 = vrot.slane %v1310, %v1326
        %v1364 = vunpack.c.l.b16 %v1278
        %v1365 = vunpack.c.h.b16 %v1278
        %v1366 = vunpack.c.l.b16 %v1279
        %v1367 = vunpack.c.h.b16 %v1279
        %v1368 = vunpack.c.l.b16 %v1280
        %v1369 = vunpack.c.h.b16 %v1280
        %v1370 = vunpack.c.l.b16 %v1281
        %v1371 = vunpack.c.h.b16 %v1281
        %v1372 = vunpack.c.l.b16 %v1282
        %v1373 = vunpack.c.h.b16 %v1282
        %v1374 = vunpack.c.l.b16 %v1283
        %v1375 = vunpack.c.h.b16 %v1283
        %v1376 = vunpack.c.l.b16 %v1284
        %v1377 = vunpack.c.h.b16 %v1284
        %v1378 = vunpack.c.l.b16 %v1285
        %v1379 = vunpack.c.h.b16 %v1285
        %v1380 = vunpack.c.l.b16 %v1286
        %v1381 = vunpack.c.h.b16 %v1286
        %v1382 = vunpack.c.l.b16 %v1287
        %v1383 = vunpack.c.h.b16 %v1287
        %v1384 = vunpack.c.l.b16 %v1288
        %v1385 = vunpack.c.h.b16 %v1288
        %v1386 = vunpack.c.l.b16 %v1289
        %v1387 = vunpack.c.h.b16 %v1289
        %v1388 = vunpack.c.l.b16 %v1290
        %v1389 = vunpack.c.h.b16 %v1290
        %v1390 = vunpack.c.l.b16 %v1291
        %v1391 = vunpack.c.h.b16 %v1291
        %v1392 = vunpack.c.l.b16 %v1292
        %v1393 = vunpack.c.h.b16 %v1292
        %v1394 = vunpack.c.l.b16 %v1293
        %v1395 = vunpack.c.h.b16 %v1293
        %v1396 = vunpack.c.l.b16 %v1294
        %v1397 = vunpack.c.h.b16 %v1294
        %v1398 = vunpack.c.l.b16 %v1295
        %v1399 = vunpack.c.h.b16 %v1295
        %v1400 = vunpack.c.l.b16 %v1296
        %v1401 = vunpack.c.h.b16 %v1296
        %v1402 = vunpack.c.l.b16 %v1297
        %v1403 = vunpack.c.h.b16 %v1297
        %v1404 = vunpack.c.l.b16 %v1298
        %v1405 = vunpack.c.h.b16 %v1298
        %v1406 = vunpack.c.l.b16 %v1299
        %v1407 = vunpack.c.h.b16 %v1299
        %v1408 = vunpack.c.l.b16 %v1300
        %v1409 = vunpack.c.h.b16 %v1300
        %v1410 = vunpack.c.l.b16 %v1301
        %v1411 = vunpack.c.h.b16 %v1301
        %v1412 = vunpack.c.l.b16 %v1302
        %v1413 = vunpack.c.h.b16 %v1302
        %v1414 = vunpack.c.l.b16 %v1303
        %v1415 = vunpack.c.h.b16 %v1303
        %v1416 = vunpack.c.l.b16 %v1304
        %v1417 = vunpack.c.h.b16 %v1304
        %v1418 = vunpack.c.l.b16 %v1305
        %v1419 = vunpack.c.h.b16 %v1305
        %v1420 = vunpack.c.l.b16 %v1306
        %v1421 = vunpack.c.h.b16 %v1306
        %v1422 = vunpack.c.l.b16 %v1307
        %v1423 = vunpack.c.h.b16 %v1307
        %v1424 = vunpack.c.l.b16 %v1308
        %v1425 = vunpack.c.h.b16 %v1308
        %v1426 = vunpack.c.l.b16 %v1309
        %v1427 = vunpack.c.h.b16 %v1309
        %v1428 = vpack.c.b16 %v1368, %v1364
        %v1429 = vpack.c.b16 %v1369, %v1365
        %v1430 = vpack.c.b16 %v1370, %v1366
        %v1431 = vpack.c.b16 %v1371, %v1367
        %v1432 = vpack.c.b16 %v1376, %v1372
        %v1433 = vpack.c.b16 %v1377, %v1373
        %v1434 = vpack.c.b16 %v1378, %v1374
        %v1435 = vpack.c.b16 %v1379, %v1375
        %v1436 = vpack.c.b16 %v1384, %v1380
        %v1437 = vpack.c.b16 %v1385, %v1381
        %v1438 = vpack.c.b16 %v1386, %v1382
        %v1439 = vpack.c.b16 %v1387, %v1383
        %v1440 = vpack.c.b16 %v1392, %v1388
        %v1441 = vpack.c.b16 %v1393, %v1389
        %v1442 = vpack.c.b16 %v1394, %v1390
        %v1443 = vpack.c.b16 %v1395, %v1391
        %v1444 = vpack.c.b16 %v1400, %v1396
        %v1445 = vpack.c.b16 %v1401, %v1397
        %v1446 = vpack.c.b16 %v1402, %v1398
        %v1447 = vpack.c.b16 %v1403, %v1399
        %v1448 = vpack.c.b16 %v1408, %v1404
        %v1449 = vpack.c.b16 %v1409, %v1405
        %v1450 = vpack.c.b16 %v1410, %v1406
        %v1451 = vpack.c.b16 %v1411, %v1407
        %v1452 = vpack.c.b16 %v1416, %v1412
        %v1453 = vpack.c.b16 %v1417, %v1413
        %v1454 = vpack.c.b16 %v1418, %v1414
        %v1455 = vpack.c.b16 %v1419, %v1415
        %v1456 = vpack.c.b16 %v1424, %v1420
        %v1457 = vpack.c.b16 %v1425, %v1421
        %v1458 = vpack.c.b16 %v1426, %v1422
        %v1459 = vpack.c.b16 %v1427, %v1423
        %1492 = vmatprep.subr.bf16.mxu0 %v1429
        %1493 = vmatpush1.bf16.msra.mxu0 %v1428
        %1494 = vmatprep.subr.bf16.mxu0 %v1433
        %1495 = vmatpush1.bf16.msra.mxu0 %v1432
        %1496 = vmatprep.subr.bf16.mxu0 %v1437
        %1497 = vmatpush1.bf16.msra.mxu0 %v1436
        %1498 = vmatprep.subr.bf16.mxu0 %v1441
        %1499 = vmatpush1.bf16.msra.mxu0 %v1440
        %1500 = vmatprep.subr.bf16.mxu0 %v1445
        %1501 = vmatpush1.bf16.msra.mxu0 %v1444
        %1502 = vmatprep.subr.bf16.mxu0 %v1449
        %1503 = vmatpush1.bf16.msra.mxu0 %v1448
        %1504 = vmatprep.subr.bf16.mxu0 %v1453
        %1505 = vmatpush1.bf16.msra.mxu0 %v1452
        %1506 = vmatprep.subr.bf16.mxu0 %v1457
        %1507 = vmatpush1.bf16.msra.mxu0 %v1456
        %1508 = vmatprep.subr.bf16.mxu0 0
        %1509 = vmatpush1.bf16.msra.mxu0 0
        %1510 = vmatprep.subr.bf16.mxu0 0
        %1511 = vmatpush1.bf16.msra.mxu0 0
        %1512 = vmatprep.subr.bf16.mxu0 0
        %1513 = vmatpush1.bf16.msra.mxu0 0
        %1514 = vmatprep.subr.bf16.mxu0 0
        %1515 = vmatpush1.bf16.msra.mxu0 0
        %1516 = vmatprep.subr.bf16.mxu0 0
        %1517 = vmatpush1.bf16.msra.mxu0 0
        %1518 = vmatprep.subr.bf16.mxu0 0
        %1519 = vmatpush1.bf16.msra.mxu0 0
        %1520 = vmatprep.subr.bf16.mxu0 0
        %1521 = vmatpush1.bf16.msra.mxu0 0
        %1522 = vmatprep.subr.bf16.mxu0 0
        %1523 = vmatpush1.bf16.msra.mxu0 0
        %1524 = vmatprep.mubr.bf16.mxu0 0
        %1525 = vmatmul.mubr.bf16.gmra.mrb[0].mxu0 %v1270
        %v1526 = vpop.f32.mrb[0].mxu0
        %v1527 = vadd.f32 %v1315, %v1526
        %v1528 = vpop.f32.mrb[0].mxu0
        %v1529 = vadd.f32 %v1319, %v1528
        %v1530 = vpop.f32.mrb[0].mxu0
        %v1531 = vadd.f32 %v1315, %v1530
        %v1532 = vpop.f32.mrb[0].mxu0
        %v1533 = vadd.f32 %v1319, %v1532
        %1534 = vmatprep.mubr.bf16.mxu0 0
        %1535 = vmatmul.mubr.bf16.gmra.mrb[0].mxu0 %v1271
        %v1536 = vpop.f32.mrb[0].mxu0
        %v1537 = vadd.f32 %v1315, %v1536
        %v1538 = vpop.f32.mrb[0].mxu0
        %v1539 = vadd.f32 %v1319, %v1538
        %v1540 = vpop.f32.mrb[0].mxu0
        %v1541 = vadd.f32 %v1315, %v1540
        %v1542 = vpop.f32.mrb[0].mxu0
        %v1543 = vadd.f32 %v1319, %v1542
        %1544 = vmatprep.mubr.bf16.mxu0 0
        %1545 = vmatmul.mubr.bf16.gmra.mrb[0].mxu0 %v1272
        %v1546 = vpop.f32.mrb[0].mxu0
        %v1547 = vadd.f32 %v1315, %v1546
        %v1548 = vpop.f32.mrb[0].mxu0
        %v1549 = vadd.f32 %v1319, %v1548
        %v1550 = vpop.f32.mrb[0].mxu0
        %v1551 = vadd.f32 %v1315, %v1550
        %v1552 = vpop.f32.mrb[0].mxu0
        %v1553 = vadd.f32 %v1319, %v1552
        %1554 = vmatprep.mubr.bf16.mxu0 0
        %1555 = vmatmul.mubr.bf16.gmra.mrb[0].mxu0 %v1273
        %v1556 = vpop.f32.mrb[0].mxu0
        %v1557 = vadd.f32 %v1315, %v1556
        %v1558 = vpop.f32.mrb[0].mxu0
        %v1559 = vadd.f32 %v1319, %v1558
        %v1560 = vpop.f32.mrb[0].mxu0
        %v1561 = vadd.f32 %v1315, %v1560
        %v1562 = vpop.f32.mrb[0].mxu0
        %v1563 = vadd.f32 %v1319, %v1562
        %1564 = vmatprep.mubr.bf16.mxu0 0
        %1565 = vmatmul.mubr.bf16.gmra.mrb[0].mxu0 %v1274
        %v1566 = vpop.f32.mrb[0].mxu0
        %v1567 = vadd.f32 %v1315, %v1566
        %v1568 = vpop.f32.mrb[0].mxu0
        %v1569 = vadd.f32 %v1319, %v1568
        %v1570 = vpop.f32.mrb[0].mxu0
        %v1571 = vadd.f32 %v1315, %v1570
        %v1572 = vpop.f32.mrb[0].mxu0
        %v1573 = vadd.f32 %v1319, %v1572
        %1574 = vmatprep.mubr.bf16.mxu0 0
        %1575 = vmatmul.mubr.bf16.gmra.mrb[0].mxu0 %v1275
        %v1576 = vpop.f32.mrb[0].mxu0
        %v1577 = vadd.f32 %v1315, %v1576
        %v1578 = vpop.f32.mrb[0].mxu0
        %v1579 = vadd.f32 %v1319, %v1578
        %v1580 = vpop.f32.mrb[0].mxu0
        %v1581 = vadd.f32 %v1315, %v1580
        %v1582 = vpop.f32.mrb[0].mxu0
        %v1583 = vadd.f32 %v1319, %v1582
        %1584 = vmatprep.mubr.bf16.mxu0 0
        %1585 = vmatmul.mubr.bf16.gmra.mrb[0].mxu0 %v1276
        %v1586 = vpop.f32.mrb[0].mxu0
        %v1587 = vadd.f32 %v1315, %v1586
        %v1588 = vpop.f32.mrb[0].mxu0
        %v1589 = vadd.f32 %v1319, %v1588
        %v1590 = vpop.f32.mrb[0].mxu0
        %v1591 = vadd.f32 %v1315, %v1590
        %v1592 = vpop.f32.mrb[0].mxu0
        %v1593 = vadd.f32 %v1319, %v1592
        %1594 = vmatprep.mubr.bf16.mxu0 0
        %1595 = vmatmul.mubr.bf16.gmra.mrb[0].mxu0 %v1277
        %v1596 = vpop.f32.mrb[0].mxu0
        %v1597 = vadd.f32 %v1315, %v1596
        %v1598 = vpop.f32.mrb[0].mxu0
        %v1599 = vadd.f32 %v1319, %v1598
        %v1600 = vpop.f32.mrb[0].mxu0
        %v1601 = vadd.f32 %v1315, %v1600
        %v1602 = vpop.f32.mrb[0].mxu0
        %v1603 = vadd.f32 %v1319, %v1602
        %1604 = vdwg.mxu0
        %1605 = vmatprep.subr.bf16.mxu0 %v1431
        %1606 = vmatpush1.bf16.msra.mxu0 %v1430
        %1607 = vmatprep.subr.bf16.mxu0 %v1435
        %1608 = vmatpush1.bf16.msra.mxu0 %v1434
        %1609 = vmatprep.subr.bf16.mxu0 %v1439
        %1610 = vmatpush1.bf16.msra.mxu0 %v1438
        %1611 = vmatprep.subr.bf16.mxu0 %v1443
        %1612 = vmatpush1.bf16.msra.mxu0 %v1442
        %1613 = vmatprep.subr.bf16.mxu0 %v1447
        %1614 = vmatpush1.bf16.msra.mxu0 %v1446
        %1615 = vmatprep.subr.bf16.mxu0 %v1451
        %1616 = vmatpush1.bf16.msra.mxu0 %v1450
        %1617 = vmatprep.subr.bf16.mxu0 %v1455
        %1618 = vmatpush1.bf16.msra.mxu0 %v1454
        %1619 = vmatprep.subr.bf16.mxu0 %v1459
        %1620 = vmatpush1.bf16.msra.mxu0 %v1458
        %1621 = vmatprep.subr.bf16.mxu0 0
        %1622 = vmatpush1.bf16.msra.mxu0 0
        %1623 = vmatprep.subr.bf16.mxu0 0
        %1624 = vmatpush1.bf16.msra.mxu0 0
        %1625 = vmatprep.subr.bf16.mxu0 0
        %1626 = vmatpush1.bf16.msra.mxu0 0
        %1627 = vmatprep.subr.bf16.mxu0 0
        %1628 = vmatpush1.bf16.msra.mxu0 0
        %1629 = vmatprep.subr.bf16.mxu0 0
        %1630 = vmatpush1.bf16.msra.mxu0 0
        %1631 = vmatprep.subr.bf16.mxu0 0
        %1632 = vmatpush1.bf16.msra.mxu0 0
        %1633 = vmatprep.subr.bf16.mxu0 0
        %1634 = vmatpush1.bf16.msra.mxu0 0
        %1635 = vmatprep.subr.bf16.mxu0 0
        %1636 = vmatpush1.bf16.msra.mxu0 0
        %1637 = vmatprep.mubr.bf16.mxu0 0
        %1638 = vmatmul.mubr.bf16.gmra.mrb[0].mxu0 %v1270
        %v1639 = vpop.f32.mrb[0].mxu0
        %v1640 = vadd.f32 %v1323, %v1639
        %v1641 = vpop.f32.mrb[0].mxu0
        %v1642 = vadd.f32 %v1327, %v1641
        %v1643 = vpop.f32.mrb[0].mxu0
        %v1644 = vadd.f32 %v1323, %v1643
        %v1645 = vpop.f32.mrb[0].mxu0
        %v1646 = vadd.f32 %v1327, %v1645
        %1647 = vmatprep.mubr.bf16.mxu0 0
        %1648 = vmatmul.mubr.bf16.gmra.mrb[0].mxu0 %v1271
        %v1649 = vpop.f32.mrb[0].mxu0
        %v1650 = vadd.f32 %v1323, %v1649
        %v1651 = vpop.f32.mrb[0].mxu0
        %v1652 = vadd.f32 %v1327, %v1651
        %v1653 = vpop.f32.mrb[0].mxu0
        %v1654 = vadd.f32 %v1323, %v1653
        %v1655 = vpop.f32.mrb[0].mxu0
        %v1656 = vadd.f32 %v1327, %v1655
        %1657 = vmatprep.mubr.bf16.mxu0 0
        %1658 = vmatmul.mubr.bf16.gmra.mrb[0].mxu0 %v1272
        %v1659 = vpop.f32.mrb[0].mxu0
        %v1660 = vadd.f32 %v1323, %v1659
        %v1661 = vpop.f32.mrb[0].mxu0
        %v1662 = vadd.f32 %v1327, %v1661
        %v1663 = vpop.f32.mrb[0].mxu0
        %v1664 = vadd.f32 %v1323, %v1663
        %v1665 = vpop.f32.mrb[0].mxu0
        %v1666 = vadd.f32 %v1327, %v1665
        %1667 = vmatprep.mubr.bf16.mxu0 0
        %1668 = vmatmul.mubr.bf16.gmra.mrb[0].mxu0 %v1273
        %v1669 = vpop.f32.mrb[0].mxu0
        %v1670 = vadd.f32 %v1323, %v1669
        %v1671 = vpop.f32.mrb[0].mxu0
        %v1672 = vadd.f32 %v1327, %v1671
        %v1673 = vpop.f32.mrb[0].mxu0
        %v1674 = vadd.f32 %v1323, %v1673
        %v1675 = vpop.f32.mrb[0].mxu0
        %v1676 = vadd.f32 %v1327, %v1675
        %1677 = vmatprep.mubr.bf16.mxu0 0
        %1678 = vmatmul.mubr.bf16.gmra.mrb[0].mxu0 %v1274
        %v1679 = vpop.f32.mrb[0].mxu0
        %v1680 = vadd.f32 %v1323, %v1679
        %v1681 = vpop.f32.mrb[0].mxu0
        %v1682 = vadd.f32 %v1327, %v1681
        %v1683 = vpop.f32.mrb[0].mxu0
        %v1684 = vadd.f32 %v1323, %v1683
        %v1685 = vpop.f32.mrb[0].mxu0
        %v1686 = vadd.f32 %v1327, %v1685
        %1687 = vmatprep.mubr.bf16.mxu0 0
        %1688 = vmatmul.mubr.bf16.gmra.mrb[0].mxu0 %v1275
        %v1689 = vpop.f32.mrb[0].mxu0
        %v1690 = vadd.f32 %v1323, %v1689
        %v1691 = vpop.f32.mrb[0].mxu0
        %v1692 = vadd.f32 %v1327, %v1691
        %v1693 = vpop.f32.mrb[0].mxu0
        %v1694 = vadd.f32 %v1323, %v1693
        %v1695 = vpop.f32.mrb[0].mxu0
        %v1696 = vadd.f32 %v1327, %v1695
        %1697 = vmatprep.mubr.bf16.mxu0 0
        %1698 = vmatmul.mubr.bf16.gmra.mrb[0].mxu0 %v1276
        %v1699 = vpop.f32.mrb[0].mxu0
        %v1700 = vadd.f32 %v1323, %v1699
        %v1701 = vpop.f32.mrb[0].mxu0
        %v1702 = vadd.f32 %v1327, %v1701
        %v1703 = vpop.f32.mrb[0].mxu0
        %v1704 = vadd.f32 %v1323, %v1703
        %v1705 = vpop.f32.mrb[0].mxu0
        %v1706 = vadd.f32 %v1327, %v1705
        %1707 = vmatprep.mubr.bf16.mxu0 0
        %1708 = vmatmul.mubr.bf16.gmra.mrb[0].mxu0 %v1277
        %v1709 = vpop.f32.mrb[0].mxu0
        %v1710 = vadd.f32 %v1323, %v1709
        %v1711 = vpop.f32.mrb[0].mxu0
        %v1712 = vadd.f32 %v1327, %v1711
        %v1713 = vpop.f32.mrb[0].mxu0
        %v1714 = vadd.f32 %v1323, %v1713
        %v1715 = vpop.f32.mrb[0].mxu0
        %v1716 = vadd.f32 %v1327, %v1715
        %1717 = vdwg.mxu0
        %1718 = vst [vmem:[%s376] sm:$0xff] %v1527
        %1719 = vst [vmem:[%s376 + $0x8] sm:$0xff] %v1529
        %1720 = vst [vmem:[%s376 + $0x10] sm:$0xff] %v1640
        %1721 = vst [vmem:[%s376 + $0x18] sm:$0xff] %v1642
        %1722 = vst [vmem:[%s376 + $0x20] sm:$0xff] %v1531
        %1723 = vst [vmem:[%s376 + $0x28] sm:$0xff] %v1533
        %1724 = vst [vmem:[%s376 + $0x30] sm:$0xff] %v1644
        %1725 = vst [vmem:[%s376 + $0x38] sm:$0xff] %v1646
        %1726 = vst [vmem:[%s376 + $0x40] sm:$0xff] %v1537
        %1727 = vst [vmem:[%s376 + $0x48] sm:$0xff] %v1539
        %1728 = vst [vmem:[%s376 + $0x50] sm:$0xff] %v1650
        %1729 = vst [vmem:[%s376 + $0x58] sm:$0xff] %v1652
        %1730 = vst [vmem:[%s376 + $0x60] sm:$0xff] %v1541
        %1731 = vst [vmem:[%s376 + $0x68] sm:$0xff] %v1543
        %1732 = vst [vmem:[%s376 + $0x70] sm:$0xff] %v1654
        %1733 = vst [vmem:[%s376 + $0x78] sm:$0xff] %v1656
        %1734 = vst [vmem:[%s376 + $0x80] sm:$0xff] %v1547
        %1735 = vst [vmem:[%s376 + $0x88] sm:$0xff] %v1549
        %1736 = vst [vmem:[%s376 + $0x90] sm:$0xff] %v1660
        %1737 = vst [vmem:[%s376 + $0x98] sm:$0xff] %v1662
        %1738 = vst [vmem:[%s376 + $0xa0] sm:$0xff] %v1551
        %1739 = vst [vmem:[%s376 + $0xa8] sm:$0xff] %v1553
        %1740 = vst [vmem:[%s376 + $0xb0] sm:$0xff] %v1664
        %1741 = vst [vmem:[%s376 + $0xb8] sm:$0xff] %v1666
        %1742 = vst [vmem:[%s376 + $0xc0] sm:$0xff] %v1557
        %1743 = vst [vmem:[%s376 + $0xc8] sm:$0xff] %v1559
        %1744 = vst [vmem:[%s376 + $0xd0] sm:$0xff] %v1670
        %1745 = vst [vmem:[%s376 + $0xd8] sm:$0xff] %v1672
        %1746 = vst [vmem:[%s376 + $0xe0] sm:$0xff] %v1561
        %1747 = vst [vmem:[%s376 + $0xe8] sm:$0xff] %v1563
        %1748 = vst [vmem:[%s376 + $0xf0] sm:$0xff] %v1674
        %1749 = vst [vmem:[%s376 + $0xf8] sm:$0xff] %v1676
        %1750 = vst [vmem:[%s376 + $0x100] sm:$0xff] %v1567
        %1751 = vst [vmem:[%s376 + $0x108] sm:$0xff] %v1569
        %1752 = vst [vmem:[%s376 + $0x110] sm:$0xff] %v1680
        %1753 = vst [vmem:[%s376 + $0x118] sm:$0xff] %v1682
        %1754 = vst [vmem:[%s376 + $0x120] sm:$0xff] %v1571
        %1755 = vst [vmem:[%s376 + $0x128] sm:$0xff] %v1573
        %1756 = vst [vmem:[%s376 + $0x130] sm:$0xff] %v1684
        %1757 = vst [vmem:[%s376 + $0x138] sm:$0xff] %v1686
        %1758 = vst [vmem:[%s376 + $0x140] sm:$0xff] %v1577
        %1759 = vst [vmem:[%s376 + $0x148] sm:$0xff] %v1579
        %1760 = vst [vmem:[%s376 + $0x150] sm:$0xff] %v1690
        %1761 = vst [vmem:[%s376 + $0x158] sm:$0xff] %v1692
        %1762 = vst [vmem:[%s376 + $0x160] sm:$0xff] %v1581
        %1763 = vst [vmem:[%s376 + $0x168] sm:$0xff] %v1583
        %1764 = vst [vmem:[%s376 + $0x170] sm:$0xff] %v1694
        %1765 = vst [vmem:[%s376 + $0x178] sm:$0xff] %v1696
        %1766 = vst [vmem:[%s376 + $0x180] sm:$0xff] %v1587
        %1767 = vst [vmem:[%s376 + $0x188] sm:$0xff] %v1589
        %1768 = vst [vmem:[%s376 + $0x190] sm:$0xff] %v1700
        %1769 = vst [vmem:[%s376 + $0x198] sm:$0xff] %v1702
        %1770 = vst [vmem:[%s376 + $0x1a0] sm:$0xff] %v1591
        %1771 = vst [vmem:[%s376 + $0x1a8] sm:$0xff] %v1593
        %1772 = vst [vmem:[%s376 + $0x1b0] sm:$0xff] %v1704
        %1773 = vst [vmem:[%s376 + $0x1b8] sm:$0xff] %v1706
        %1774 = vst [vmem:[%s376 + $0x1c0] sm:$0xff] %v1597
        %1775 = vst [vmem:[%s376 + $0x1c8] sm:$0xff] %v1599
        %1776 = vst [vmem:[%s376 + $0x1d0] sm:$0xff] %v1710
        %1777 = vst [vmem:[%s376 + $0x1d8] sm:$0xff] %v1712
        %1778 = vst [vmem:[%s376 + $0x1e0] sm:$0xff] %v1601
        %1779 = vst [vmem:[%s376 + $0x1e8] sm:$0xff] %v1603
        %1780 = vst [vmem:[%s376 + $0x1f0] sm:$0xff] %v1714
        %1781 = vst [vmem:[%s376 + $0x1f8] sm:$0xff] %v1716
        %s1782 = sand.u32 %s209, 1
        %s1783 = scalar_lea.sflag [#allocation5], %s1782
        %s1784 = sand.u32 %s209, 1
        %s1785 = smul.addr %s1784, 512
        %s1786 = scalar_lea.vmem [#allocation9], %s1785
        // Predicated region
        $region65: #{tpu_custom_call.1} parent=47 // pred_check
          %p1787 = pneg %p219
        $region66: #{tpu_custom_call.1} parent=47 // pred_check_branch
          %1789 = sbr.rel (%p1787) target = $region68
        $region67: #{tpu_custom_call.1} parent=47 // pred_region
          %s1790 = smul.u32 16, %s29
          %s1791 = smul.u32 4, %s30
          %s1793 = ssub.s32 8192, 8192
          %1794 = vsyncadd %s1783, %s1793
          %s1795 = smul.addr %s1790, 8
          %s1796 = sadd.s32 %s1791, %s1795
          %s1797 = smul.addr %s1796, 128
          %s1798 = scalar_lea.hbm %s7, %s1797
          %s1799 = sshll.u32 %s1786, 4
          %s1800 = int_to_ptr.vmem [resolvable:$true] %s1799
          %1805 = dma.vmem_to_hbm [thread:$0]  %s1800, 8192, %s1798, %s1783, 512, 1024, 32
        $region68: #{tpu_custom_call.1} parent=47 // pred_fallthru
          _
      $region48: #{tpu_custom_call.1} parent=5 // pred_fallthru
        _
      %p1806 = scmp.le.s32.totalorder 2, %s20
      // Predicated region
      $region69: #{tpu_custom_call.1} parent=5 // pred_check
        %p1807 = pneg %p1806
      $region70: #{tpu_custom_call.1} parent=5 // pred_check_branch
        %1809 = sbr.rel (%p1807) target = $region72
      $region71: #{tpu_custom_call.1} parent=5 // pred_region
        %s1810 = ssub.s32 %s20, 2
        // Predicated region
        $region73: #{tpu_custom_call.1} parent=71 // pred_check
          %p1811 = pneg %p225
        $region74: #{tpu_custom_call.1} parent=71 // pred_check_branch
          %1813 = sbr.rel (%p1811) target = $region76
        $region75: #{tpu_custom_call.1} parent=71 // pred_region
          %s1814 = sand.u32 %s210, 1
          %s1815 = scalar_lea.sflag [#allocation5], %s1814
          %s1816 = sand.u32 %s210, 1
          %s1817 = smul.addr %s1816, 512
          %s1818 = scalar_lea.vmem [#allocation9], %s1817
          %1819 = dma.done %s1815, 8192
        $region76: #{tpu_custom_call.1} parent=71 // pred_fallthru
          _
      $region72: #{tpu_custom_call.1} parent=5 // pred_fallthru
        _
    $region6: #{tpu_custom_call.1} parent=1 // loop_footer
      %s24 = sadd.s32 1, %s20
    $region7: #{tpu_custom_call.1} parent=1 // loop_footer_branch
      %19 = sbr.rel target = $region3
    $region8: #{tpu_custom_call.1} parent=1 // loop_exit
      _
    %1820 = vsyncpa [#allocation4], 1
    %s1821 = scalar_lea.sflag [#allocation4], 1
    %1822 = vsyncpa %s1821, 1
    %1823 = vsyncpa [#allocation7], 1
    %1824 = vsyncpa [#allocation5], 1
    %s1825 = scalar_lea.sflag [#allocation5], 1
    %1826 = vsyncpa %s1825, 1

</llo_original>
